<compile_context>
chip_gen: v7x
topology: tpu7x:2x2x1
jax: 0.10.0
libtpu: 0.0.40
codegen_flags: <defaults>
</compile_context>

<pallas_src>
import functools

import jax
import jax.numpy as jnp
import numpy as np
from jax.experimental import pallas as pl
from jax.experimental.pallas import tpu as pltpu

LATENT_DIM = 100
LATENT_PAD = 128          # lane-aligned padded input width (zero columns)
H1 = 256
H2 = 512
H3 = 256
OUTPUT_DIM = 10
OUTPUT_PAD = 128          # lane-dense padded output width (zero cols, sliced off)
LN_EPS = 1e-5
LRELU_SLOPE = 0.2


def _round_up(x, m):
    return (x + m - 1) // m * m


def _cdiv(a, b):
    return -(-a // b)


def _ln_lrelu_bf16(x, gamma, beta):
    """LayerNorm (single-pass f32 stats) -> LeakyReLU(0.2) -> bf16 MXU operand."""
    n = x.shape[-1]
    inv_n = jnp.float32(1.0 / n)
    s1 = jnp.sum(x, axis=-1, keepdims=True)
    s2 = jnp.sum(x * x, axis=-1, keepdims=True)      # independent of s1 -> XLU overlap
    mu = s1 * inv_n
    var = s2 * inv_n - mu * mu
    rstd = jax.lax.rsqrt(var + LN_EPS)
    y = (x - mu) * (rstd * gamma) + beta
    y = jnp.maximum(y, LRELU_SLOPE * y)               # leaky relu, 2 VALU ops
    return y.astype(jnp.bfloat16)


def physics_generator_kernel(
    z_ref,
    w1_ref, b1_ref, g1_ref, be1_ref,
    w2_ref, b2_ref, g2_ref, be2_ref,
    w3_ref, b3_ref, g3_ref, be3_ref,
    w4_ref, b4_ref,
    out_ref,
):
    z = z_ref[...]                                    # already bf16 (wrapper cast)

    # fc1 -> ln1 -> leaky_relu  (h1 kept bf16: fc2 LHS + residual copy)
    a1 = jnp.dot(z, w1_ref[...], preferred_element_type=jnp.float32) + b1_ref[...]
    h1 = _ln_lrelu_bf16(a1, g1_ref[...], be1_ref[...])

    # fc2 -> ln2 -> leaky_relu
    a2 = jnp.dot(h1, w2_ref[...], preferred_element_type=jnp.float32) + b2_ref[...]
    h2 = _ln_lrelu_bf16(a2, g2_ref[...], be2_ref[...])

    # fc3 -> ln3 -> leaky_relu
    a3 = jnp.dot(h2, w3_ref[...], preferred_element_type=jnp.float32) + b3_ref[...]
    h3 = _ln_lrelu_bf16(a3, g3_ref[...], be3_ref[...])

    # residual connection with h1 (bf16; error well inside test tolerance)
    h = h3 + h1

    # fc4 -> tanh (padded output columns are all zeros -> tanh(0)=0, sliced off outside)
    a4 = jnp.dot(h, w4_ref[...], preferred_element_type=jnp.float32) + b4_ref[...]
    out_ref[...] = jnp.tanh(a4).astype(out_ref.dtype)


def prepare_params(params):
    """One-time layout plumbing: pad to 128 lanes, cast MXU weights to bf16.

    Called once when parameters are created/loaded, NOT on every forward call.
    """
    (w1, b1, g1, be1, w2, b2, g2, be2, w3, b3, g3, be3, w4, b4) = params
    w1p = jnp.pad(w1, ((0, LATENT_PAD - LATENT_DIM), (0, 0))).astype(jnp.bfloat16)
    w2p = w2.astype(jnp.bfloat16)
    w3p = w3.astype(jnp.bfloat16)
    w4p = jnp.pad(w4, ((0, 0), (0, OUTPUT_PAD - OUTPUT_DIM))).astype(jnp.bfloat16)
    b4p = jnp.pad(b4, ((0, 0), (0, OUTPUT_PAD - OUTPUT_DIM)))
    return (w1p, b1, g1, be1, w2p, b2, g2, be2, w3p, b3, g3, be3, w4p, b4p)


@functools.partial(jax.jit, static_argnames=("bm", "core_parallel"))
def physics_generator(z, prepared_params, *, bm=256, core_parallel=False):
    """z: (B, LATENT_DIM) float32. prepared_params: output of prepare_params().

    Returns (B, OUTPUT_DIM) float32. For large batches on v5e/v6e, bm=512..1024
    amortizes per-grid-step overhead; VMEM use stays a few MB per tile.
    """
    B, D = z.shape
    assert D == LATENT_DIM

    # --- batch tiling: waste bounded by 8 rows (sublane), not a full tile ---
    B_pad8 = _round_up(B, 8)
    n_tiles = max(1, _cdiv(B_pad8, bm))
    bm_eff = _round_up(_cdiv(B_pad8, n_tiles), 8)
    B_pad = bm_eff * n_tiles

    # --- per-call input plumbing only: pad 100->128 lanes and cast to bf16 ---
    z_p = jnp.pad(z, ((0, B_pad - B), (0, LATENT_PAD - LATENT_DIM))).astype(jnp.bfloat16)

    def full_spec(arr):
        # whole 2-D parameter resident in VMEM; constant block index -> fetched once
        return pl.BlockSpec(arr.shape, lambda i: (0, 0))

    grid = (n_tiles,)
    in_specs = [pl.BlockSpec((bm_eff, LATENT_PAD), lambda i: (i, 0))]
    in_specs += [full_spec(p) for p in prepared_params]
    out_spec = pl.BlockSpec((bm_eff, OUTPUT_PAD), lambda i: (i, 0))

    if core_parallel and n_tiles >= 2:
        # v7x: shard the batch axis across the 2 TensorCores.
        dim_semantics = (pltpu.CORE_PARALLEL,)
    else:
        dim_semantics = ("parallel",)

    flops = 2 * B_pad * (LATENT_PAD * H1 + H1 * H2 + H2 * H3 + H3 * OUTPUT_PAD)
    transcendentals = B_pad * (3 + OUTPUT_PAD)  # 3 rsqrt (LayerNorms) + tanh per row
    bytes_accessed = (
        sum(int(np.prod(p.shape)) * p.dtype.itemsize for p in prepared_params)
        + B_pad * LATENT_PAD * 2     # bf16 z
        + B_pad * OUTPUT_PAD * 4     # f32 out
    )

    out = pl.pallas_call(
        physics_generator_kernel,
        out_shape=jax.ShapeDtypeStruct((B_pad, OUTPUT_PAD), jnp.float32),
        grid_spec=pltpu.PrefetchScalarGridSpec(
            num_scalar_prefetch=0,
            grid=grid,
            in_specs=in_specs,
            out_specs=out_spec,
        ),
        compiler_params=pltpu.CompilerParams(
            dimension_semantics=dim_semantics,
        ),
        cost_estimate=pl.CostEstimate(
            flops=flops,
            transcendentals=transcendentals,
            bytes_accessed=bytes_accessed,
        ),
    )(z_p, *prepared_params)

    return out[:B, :OUTPUT_DIM]


def _has_multiple_tensorcores():
    """True for v7x-class chips with 2 TensorCores per chip."""
    try:
        kind = jax.devices()[0].device_kind.lower()
    except Exception:
        return False
    return "v7" in kind


# ----------------------------- reference path ------------------------------

def init_params(key):
    """Deterministic synthetic f32 parameters matching the PyTorch module shapes."""
    ks = jax.random.split(key, 8)

    def linear(kw, kb, din, dout):
        w = jax.random.normal(kw, (din, dout), jnp.float32) * (1.0 / np.sqrt(din))
        b = jax.random.normal(kb, (1, dout), jnp.float32) * 0.01
        return w, b

    w1, b1 = linear(ks[0], ks[1], LATENT_DIM, H1)
    w2, b2 = linear(ks[2], ks[3], H1, H2)
    w3, b3 = linear(ks[4], ks[5], H2, H3)
    w4, b4 = linear(ks[6], ks[7], H3, OUTPUT_DIM)

    # LayerNorm affine params (PyTorch default init: gamma=1, beta=0)
    g1, be1 = jnp.ones((1, H1), jnp.float32), jnp.zeros((1, H1), jnp.float32)
    g2, be2 = jnp.ones((1, H2), jnp.float32), jnp.zeros((1, H2), jnp.float32)
    g3, be3 = jnp.ones((1, H3), jnp.float32), jnp.zeros((1, H3), jnp.float32)

    return (w1, b1, g1, be1, w2, b2, g2, be2, w3, b3, g3, be3, w4, b4)


def reference(z, params):
    """Pure-JAX f32 reference matching the PyTorch forward."""
    (w1, b1, g1, be1, w2, b2, g2, be2, w3, b3, g3, be3, w4, b4) = params

    def ln(x, g, b):
        mu = jnp.mean(x, axis=-1, keepdims=True)
        var = jnp.mean(jnp.square(x - mu), axis=-1, keepdims=True)
        return (x - mu) * jax.lax.rsqrt(var + LN_EPS) * g + b

    def lrelu(x):
        return jnp.where(x > 0, x, LRELU_SLOPE * x)

    h1 = lrelu(ln(z @ w1 + b1, g1, be1))
    h2 = lrelu(ln(h1 @ w2 + b2, g2, be2))
    h3 = lrelu(ln(h2 @ w3 + b3, g3, be3))
    h3 = h3 + h1
    return jnp.tanh(h3 @ w4 + b4)


if __name__ == "__main__":
    key = jax.random.PRNGKey(0)
    k_z, k_p = jax.random.split(key)

    # Small shapes: batch=64 with bm=32 -> grid=(2,), exercising the multi-tile
    # path while staying tiny. latent_dim/output_dim fixed by the module spec.
    B = 64
    z = jax.random.normal(k_z, (B, LATENT_DIM), jnp.float32)
    params = init_params(k_p)

    # One-time weight preparation (hoisted out of the per-call path).
    prepped = prepare_params(params)
    prepped = jax.block_until_ready(prepped)

    out = physics_generator(z, prepped, bm=32,
                            core_parallel=_has_multiple_tensorcores())
    out = jax.block_until_ready(out)

    ref = jax.block_until_ready(reference(z, params))
    # bf16 MXU operands / bf16 residual with f32 accumulation & LN stats ->
    # loosened tolerance vs the pure-f32 reference (output bounded in [-1,1]).
    np.testing.assert_allclose(np.asarray(out), np.asarray(ref), atol=4e-2, rtol=4e-2)

    assert out.shape == (B, OUTPUT_DIM)
    print("KERNEL_OK")
</pallas_src>

<mosaic_0001>
module attributes {stable_mosaic.version = 11 : i64} {
  func.func @physics_generator_kernel(%arg0: i32, %arg1: memref<32x128xbf16, #tpu.memory_space<vmem>>, %arg2: memref<128x256xbf16, #tpu.memory_space<vmem>>, %arg3: memref<1x256xf32, #tpu.memory_space<vmem>>, %arg4: memref<1x256xf32, #tpu.memory_space<vmem>>, %arg5: memref<1x256xf32, #tpu.memory_space<vmem>>, %arg6: memref<256x512xbf16, #tpu.memory_space<vmem>>, %arg7: memref<1x512xf32, #tpu.memory_space<vmem>>, %arg8: memref<1x512xf32, #tpu.memory_space<vmem>>, %arg9: memref<1x512xf32, #tpu.memory_space<vmem>>, %arg10: memref<512x256xbf16, #tpu.memory_space<vmem>>, %arg11: memref<1x256xf32, #tpu.memory_space<vmem>>, %arg12: memref<1x256xf32, #tpu.memory_space<vmem>>, %arg13: memref<1x256xf32, #tpu.memory_space<vmem>>, %arg14: memref<256x128xbf16, #tpu.memory_space<vmem>>, %arg15: memref<1x128xf32, #tpu.memory_space<vmem>>, %arg16: memref<32x128xf32, #tpu.memory_space<vmem>>) attributes {dimension_semantics = [#tpu.dimension_semantics<parallel>], iteration_bounds = array<i64: 2>, scalar_prefetch = 0 : i64, scratch_operands = 0 : i64, tpu.core_type = #tpu.core_type<tc>, window_params = [{transform_indices = @transform_0, window_bounds = array<i64: 32, 128>}, {pipeline_mode = #tpu.pipeline_mode<synchronous>, transform_indices = @transform_1, window_bounds = array<i64: 128, 256>}, {pipeline_mode = #tpu.pipeline_mode<synchronous>, transform_indices = @transform_2, window_bounds = array<i64: 1, 256>}, {pipeline_mode = #tpu.pipeline_mode<synchronous>, transform_indices = @transform_3, window_bounds = array<i64: 1, 256>}, {pipeline_mode = #tpu.pipeline_mode<synchronous>, transform_indices = @transform_4, window_bounds = array<i64: 1, 256>}, {pipeline_mode = #tpu.pipeline_mode<synchronous>, transform_indices = @transform_5, window_bounds = array<i64: 256, 512>}, {pipeline_mode = #tpu.pipeline_mode<synchronous>, transform_indices = @transform_6, window_bounds = array<i64: 1, 512>}, {pipeline_mode = #tpu.pipeline_mode<synchronous>, transform_indices = @transform_7, window_bounds = array<i64: 1, 512>}, {pipeline_mode = #tpu.pipeline_mode<synchronous>, transform_indices = @transform_8, window_bounds = array<i64: 1, 512>}, {pipeline_mode = #tpu.pipeline_mode<synchronous>, transform_indices = @transform_9, window_bounds = array<i64: 512, 256>}, {pipeline_mode = #tpu.pipeline_mode<synchronous>, transform_indices = @transform_10, window_bounds = array<i64: 1, 256>}, {pipeline_mode = #tpu.pipeline_mode<synchronous>, transform_indices = @transform_11, window_bounds = array<i64: 1, 256>}, {pipeline_mode = #tpu.pipeline_mode<synchronous>, transform_indices = @transform_12, window_bounds = array<i64: 1, 256>}, {pipeline_mode = #tpu.pipeline_mode<synchronous>, transform_indices = @transform_13, window_bounds = array<i64: 256, 128>}, {pipeline_mode = #tpu.pipeline_mode<synchronous>, transform_indices = @transform_14, window_bounds = array<i64: 1, 128>}, {transform_indices = @transform_15, window_bounds = array<i64: 32, 128>}]} {
    %c0 = arith.constant 0 : index
    %c0_0 = arith.constant 0 : index
    %0 = vector.load %arg1[%c0, %c0_0] : memref<32x128xbf16, #tpu.memory_space<vmem>>, vector<32x128xbf16>
    %c0_1 = arith.constant 0 : index
    %c0_2 = arith.constant 0 : index
    %1 = vector.load %arg2[%c0_1, %c0_2] : memref<128x256xbf16, #tpu.memory_space<vmem>>, vector<128x256xbf16>
    %cst = arith.constant dense<0.000000e+00> : vector<32x256xf32>
    %2 = tpu.matmul %0, %1, %cst {dimension_numbers = #tpu.dot_dimension_numbers<[1], [0], [0], [1], [0, 0, 1, 1], [], []>} : vector<32x128xbf16>, vector<128x256xbf16>, vector<32x256xf32> -> vector<32x256xf32>
    %c0_3 = arith.constant 0 : index
    %c0_4 = arith.constant 0 : index
    %3 = vector.load %arg3[%c0_3, %c0_4] : memref<1x256xf32, #tpu.memory_space<vmem>>, vector<1x256xf32>
    %4 = vector.broadcast %3 : vector<1x256xf32> to vector<32x256xf32>
    %5 = arith.addf %2, %4 : vector<32x256xf32>
    %c0_5 = arith.constant 0 : index
    %c0_6 = arith.constant 0 : index
    %6 = vector.load %arg4[%c0_5, %c0_6] : memref<1x256xf32, #tpu.memory_space<vmem>>, vector<1x256xf32>
    %c0_7 = arith.constant 0 : index
    %c0_8 = arith.constant 0 : index
    %7 = vector.load %arg5[%c0_7, %c0_8] : memref<1x256xf32, #tpu.memory_space<vmem>>, vector<1x256xf32>
    %cst_9 = arith.constant dense<0.000000e+00> : vector<32xf32>
    %8 = vector.multi_reduction <add>, %5, %cst_9 [1] : vector<32x256xf32> to vector<32xf32>
    %9 = vector.shape_cast %8 : vector<32xf32> to vector<32x1xf32>
    %10 = arith.mulf %5, %5 : vector<32x256xf32>
    %cst_10 = arith.constant dense<0.000000e+00> : vector<32xf32>
    %11 = vector.multi_reduction <add>, %10, %cst_10 [1] : vector<32x256xf32> to vector<32xf32>
    %12 = vector.shape_cast %11 : vector<32xf32> to vector<32x1xf32>
    %cst_11 = arith.constant 3.906250e-03 : f32
    %13 = vector.broadcast %cst_11 : f32 to vector<32x1xf32>
    %14 = arith.mulf %9, %13 : vector<32x1xf32>
    %cst_12 = arith.constant 3.906250e-03 : f32
    %15 = vector.broadcast %cst_12 : f32 to vector<32x1xf32>
    %16 = arith.mulf %12, %15 : vector<32x1xf32>
    %17 = arith.mulf %14, %14 : vector<32x1xf32>
    %18 = arith.subf %16, %17 : vector<32x1xf32>
    %cst_13 = arith.constant 9.99999974E-6 : f32
    %19 = vector.broadcast %cst_13 : f32 to vector<32x1xf32>
    %20 = arith.addf %18, %19 : vector<32x1xf32>
    %21 = math.rsqrt %20 : vector<32x1xf32>
    %22 = vector.broadcast %14 : vector<32x1xf32> to vector<32x256xf32>
    %23 = arith.subf %5, %22 : vector<32x256xf32>
    %24 = vector.broadcast %21 : vector<32x1xf32> to vector<32x256xf32>
    %25 = vector.broadcast %6 : vector<1x256xf32> to vector<32x256xf32>
    %26 = arith.mulf %24, %25 : vector<32x256xf32>
    %27 = arith.mulf %23, %26 : vector<32x256xf32>
    %28 = vector.broadcast %7 : vector<1x256xf32> to vector<32x256xf32>
    %29 = arith.addf %27, %28 : vector<32x256xf32>
    %cst_14 = arith.constant 2.000000e-01 : f32
    %30 = vector.broadcast %cst_14 : f32 to vector<32x256xf32>
    %31 = arith.mulf %30, %29 : vector<32x256xf32>
    %32 = arith.maximumf %29, %31 : vector<32x256xf32>
    %33 = arith.truncf %32 : vector<32x256xf32> to vector<32x256xbf16>
    %c0_15 = arith.constant 0 : index
    %c0_16 = arith.constant 0 : index
    %34 = vector.load %arg6[%c0_15, %c0_16] : memref<256x512xbf16, #tpu.memory_space<vmem>>, vector<256x512xbf16>
    %cst_17 = arith.constant dense<0.000000e+00> : vector<32x512xf32>
    %35 = tpu.matmul %33, %34, %cst_17 {dimension_numbers = #tpu.dot_dimension_numbers<[1], [0], [0], [1], [0, 0, 1, 1], [], []>} : vector<32x256xbf16>, vector<256x512xbf16>, vector<32x512xf32> -> vector<32x512xf32>
    %c0_18 = arith.constant 0 : index
    %c0_19 = arith.constant 0 : index
    %36 = vector.load %arg7[%c0_18, %c0_19] : memref<1x512xf32, #tpu.memory_space<vmem>>, vector<1x512xf32>
    %37 = vector.broadcast %36 : vector<1x512xf32> to vector<32x512xf32>
    %38 = arith.addf %35, %37 : vector<32x512xf32>
    %c0_20 = arith.constant 0 : index
    %c0_21 = arith.constant 0 : index
    %39 = vector.load %arg8[%c0_20, %c0_21] : memref<1x512xf32, #tpu.memory_space<vmem>>, vector<1x512xf32>
    %c0_22 = arith.constant 0 : index
    %c0_23 = arith.constant 0 : index
    %40 = vector.load %arg9[%c0_22, %c0_23] : memref<1x512xf32, #tpu.memory_space<vmem>>, vector<1x512xf32>
    %cst_24 = arith.constant dense<0.000000e+00> : vector<32xf32>
    %41 = vector.multi_reduction <add>, %38, %cst_24 [1] : vector<32x512xf32> to vector<32xf32>
    %42 = vector.shape_cast %41 : vector<32xf32> to vector<32x1xf32>
    %43 = arith.mulf %38, %38 : vector<32x512xf32>
    %cst_25 = arith.constant dense<0.000000e+00> : vector<32xf32>
    %44 = vector.multi_reduction <add>, %43, %cst_25 [1] : vector<32x512xf32> to vector<32xf32>
    %45 = vector.shape_cast %44 : vector<32xf32> to vector<32x1xf32>
    %cst_26 = arith.constant 0.001953125 : f32
    %46 = vector.broadcast %cst_26 : f32 to vector<32x1xf32>
    %47 = arith.mulf %42, %46 : vector<32x1xf32>
    %cst_27 = arith.constant 0.001953125 : f32
    %48 = vector.broadcast %cst_27 : f32 to vector<32x1xf32>
    %49 = arith.mulf %45, %48 : vector<32x1xf32>
    %50 = arith.mulf %47, %47 : vector<32x1xf32>
    %51 = arith.subf %49, %50 : vector<32x1xf32>
    %cst_28 = arith.constant 9.99999974E-6 : f32
    %52 = vector.broadcast %cst_28 : f32 to vector<32x1xf32>
    %53 = arith.addf %51, %52 : vector<32x1xf32>
    %54 = math.rsqrt %53 : vector<32x1xf32>
    %55 = vector.broadcast %47 : vector<32x1xf32> to vector<32x512xf32>
    %56 = arith.subf %38, %55 : vector<32x512xf32>
    %57 = vector.broadcast %54 : vector<32x1xf32> to vector<32x512xf32>
    %58 = vector.broadcast %39 : vector<1x512xf32> to vector<32x512xf32>
    %59 = arith.mulf %57, %58 : vector<32x512xf32>
    %60 = arith.mulf %56, %59 : vector<32x512xf32>
    %61 = vector.broadcast %40 : vector<1x512xf32> to vector<32x512xf32>
    %62 = arith.addf %60, %61 : vector<32x512xf32>
    %cst_29 = arith.constant 2.000000e-01 : f32
    %63 = vector.broadcast %cst_29 : f32 to vector<32x512xf32>
    %64 = arith.mulf %63, %62 : vector<32x512xf32>
    %65 = arith.maximumf %62, %64 : vector<32x512xf32>
    %66 = arith.truncf %65 : vector<32x512xf32> to vector<32x512xbf16>
    %c0_30 = arith.constant 0 : index
    %c0_31 = arith.constant 0 : index
    %67 = vector.load %arg10[%c0_30, %c0_31] : memref<512x256xbf16, #tpu.memory_space<vmem>>, vector<512x256xbf16>
    %cst_32 = arith.constant dense<0.000000e+00> : vector<32x256xf32>
    %68 = tpu.matmul %66, %67, %cst_32 {dimension_numbers = #tpu.dot_dimension_numbers<[1], [0], [0], [1], [0, 0, 1, 1], [], []>} : vector<32x512xbf16>, vector<512x256xbf16>, vector<32x256xf32> -> vector<32x256xf32>
    %c0_33 = arith.constant 0 : index
    %c0_34 = arith.constant 0 : index
    %69 = vector.load %arg11[%c0_33, %c0_34] : memref<1x256xf32, #tpu.memory_space<vmem>>, vector<1x256xf32>
    %70 = vector.broadcast %69 : vector<1x256xf32> to vector<32x256xf32>
    %71 = arith.addf %68, %70 : vector<32x256xf32>
    %c0_35 = arith.constant 0 : index
    %c0_36 = arith.constant 0 : index
    %72 = vector.load %arg12[%c0_35, %c0_36] : memref<1x256xf32, #tpu.memory_space<vmem>>, vector<1x256xf32>
    %c0_37 = arith.constant 0 : index
    %c0_38 = arith.constant 0 : index
    %73 = vector.load %arg13[%c0_37, %c0_38] : memref<1x256xf32, #tpu.memory_space<vmem>>, vector<1x256xf32>
    %cst_39 = arith.constant dense<0.000000e+00> : vector<32xf32>
    %74 = vector.multi_reduction <add>, %71, %cst_39 [1] : vector<32x256xf32> to vector<32xf32>
    %75 = vector.shape_cast %74 : vector<32xf32> to vector<32x1xf32>
    %76 = arith.mulf %71, %71 : vector<32x256xf32>
    %cst_40 = arith.constant dense<0.000000e+00> : vector<32xf32>
    %77 = vector.multi_reduction <add>, %76, %cst_40 [1] : vector<32x256xf32> to vector<32xf32>
    %78 = vector.shape_cast %77 : vector<32xf32> to vector<32x1xf32>
    %cst_41 = arith.constant 3.906250e-03 : f32
    %79 = vector.broadcast %cst_41 : f32 to vector<32x1xf32>
    %80 = arith.mulf %75, %79 : vector<32x1xf32>
    %cst_42 = arith.constant 3.906250e-03 : f32
    %81 = vector.broadcast %cst_42 : f32 to vector<32x1xf32>
    %82 = arith.mulf %78, %81 : vector<32x1xf32>
    %83 = arith.mulf %80, %80 : vector<32x1xf32>
    %84 = arith.subf %82, %83 : vector<32x1xf32>
    %cst_43 = arith.constant 9.99999974E-6 : f32
    %85 = vector.broadcast %cst_43 : f32 to vector<32x1xf32>
    %86 = arith.addf %84, %85 : vector<32x1xf32>
    %87 = math.rsqrt %86 : vector<32x1xf32>
    %88 = vector.broadcast %80 : vector<32x1xf32> to vector<32x256xf32>
    %89 = arith.subf %71, %88 : vector<32x256xf32>
    %90 = vector.broadcast %87 : vector<32x1xf32> to vector<32x256xf32>
    %91 = vector.broadcast %72 : vector<1x256xf32> to vector<32x256xf32>
    %92 = arith.mulf %90, %91 : vector<32x256xf32>
    %93 = arith.mulf %89, %92 : vector<32x256xf32>
    %94 = vector.broadcast %73 : vector<1x256xf32> to vector<32x256xf32>
    %95 = arith.addf %93, %94 : vector<32x256xf32>
    %cst_44 = arith.constant 2.000000e-01 : f32
    %96 = vector.broadcast %cst_44 : f32 to vector<32x256xf32>
    %97 = arith.mulf %96, %95 : vector<32x256xf32>
    %98 = arith.maximumf %95, %97 : vector<32x256xf32>
    %99 = arith.truncf %98 : vector<32x256xf32> to vector<32x256xbf16>
    %100 = arith.addf %99, %33 : vector<32x256xbf16>
    %c0_45 = arith.constant 0 : index
    %c0_46 = arith.constant 0 : index
    %101 = vector.load %arg14[%c0_45, %c0_46] : memref<256x128xbf16, #tpu.memory_space<vmem>>, vector<256x128xbf16>
    %cst_47 = arith.constant dense<0.000000e+00> : vector<32x128xf32>
    %102 = tpu.matmul %100, %101, %cst_47 {dimension_numbers = #tpu.dot_dimension_numbers<[1], [0], [0], [1], [0, 0, 1, 1], [], []>} : vector<32x256xbf16>, vector<256x128xbf16>, vector<32x128xf32> -> vector<32x128xf32>
    %c0_48 = arith.constant 0 : index
    %c0_49 = arith.constant 0 : index
    %103 = vector.load %arg15[%c0_48, %c0_49] : memref<1x128xf32, #tpu.memory_space<vmem>>, vector<1x128xf32>
    %104 = vector.broadcast %103 : vector<1x128xf32> to vector<32x128xf32>
    %105 = arith.addf %102, %104 : vector<32x128xf32>
    %106 = math.tanh %105 : vector<32x128xf32>
    %c0_50 = arith.constant 0 : index
    %c0_51 = arith.constant 0 : index
    %107 = vector.load %arg16[%c0_50, %c0_51] : memref<32x128xf32, #tpu.memory_space<vmem>>, vector<32x128xf32>
    tpu.vector_store %arg16[%c0_50, %c0_51], %106 {strides = array<i32>} : memref<32x128xf32, #tpu.memory_space<vmem>>, vector<32x128xf32>,
    return
  }
  func.func @transform_0(%arg0: i32) -> (i32, i32) {
    %c0_i32 = arith.constant 0 : i32
    %c0_i32_0 = arith.constant 0 : i32
    return %arg0, %c0_i32 : i32, i32
  }
  func.func @transform_1(%arg0: i32) -> (i32, i32) {
    %c0_i32 = arith.constant 0 : i32
    %c0_i32_0 = arith.constant 0 : i32
    %c0_i32_1 = arith.constant 0 : i32
    return %c0_i32, %c0_i32_0 : i32, i32
  }
  func.func @transform_2(%arg0: i32) -> (i32, i32) {
    %c0_i32 = arith.constant 0 : i32
    %c0_i32_0 = arith.constant 0 : i32
    %c0_i32_1 = arith.constant 0 : i32
    return %c0_i32, %c0_i32_0 : i32, i32
  }
  func.func @transform_3(%arg0: i32) -> (i32, i32) {
    %c0_i32 = arith.constant 0 : i32
    %c0_i32_0 = arith.constant 0 : i32
    %c0_i32_1 = arith.constant 0 : i32
    return %c0_i32, %c0_i32_0 : i32, i32
  }
  func.func @transform_4(%arg0: i32) -> (i32, i32) {
    %c0_i32 = arith.constant 0 : i32
    %c0_i32_0 = arith.constant 0 : i32
    %c0_i32_1 = arith.constant 0 : i32
    return %c0_i32, %c0_i32_0 : i32, i32
  }
  func.func @transform_5(%arg0: i32) -> (i32, i32) {
    %c0_i32 = arith.constant 0 : i32
    %c0_i32_0 = arith.constant 0 : i32
    %c0_i32_1 = arith.constant 0 : i32
    return %c0_i32, %c0_i32_0 : i32, i32
  }
  func.func @transform_6(%arg0: i32) -> (i32, i32) {
    %c0_i32 = arith.constant 0 : i32
    %c0_i32_0 = arith.constant 0 : i32
    %c0_i32_1 = arith.constant 0 : i32
    return %c0_i32, %c0_i32_0 : i32, i32
  }
  func.func @transform_7(%arg0: i32) -> (i32, i32) {
    %c0_i32 = arith.constant 0 : i32
    %c0_i32_0 = arith.constant 0 : i32
    %c0_i32_1 = arith.constant 0 : i32
    return %c0_i32, %c0_i32_0 : i32, i32
  }
  func.func @transform_8(%arg0: i32) -> (i32, i32) {
    %c0_i32 = arith.constant 0 : i32
    %c0_i32_0 = arith.constant 0 : i32
    %c0_i32_1 = arith.constant 0 : i32
    return %c0_i32, %c0_i32_0 : i32, i32
  }
  func.func @transform_9(%arg0: i32) -> (i32, i32) {
    %c0_i32 = arith.constant 0 : i32
    %c0_i32_0 = arith.constant 0 : i32
    %c0_i32_1 = arith.constant 0 : i32
    return %c0_i32, %c0_i32_0 : i32, i32
  }
  func.func @transform_10(%arg0: i32) -> (i32, i32) {
    %c0_i32 = arith.constant 0 : i32
    %c0_i32_0 = arith.constant 0 : i32
    %c0_i32_1 = arith.constant 0 : i32
    return %c0_i32, %c0_i32_0 : i32, i32
  }
  func.func @transform_11(%arg0: i32) -> (i32, i32) {
    %c0_i32 = arith.constant 0 : i32
    %c0_i32_0 = arith.constant 0 : i32
    %c0_i32_1 = arith.constant 0 : i32
    return %c0_i32, %c0_i32_0 : i32, i32
  }
  func.func @transform_12(%arg0: i32) -> (i32, i32) {
    %c0_i32 = arith.constant 0 : i32
    %c0_i32_0 = arith.constant 0 : i32
    %c0_i32_1 = arith.constant 0 : i32
    return %c0_i32, %c0_i32_0 : i32, i32
  }
  func.func @transform_13(%arg0: i32) -> (i32, i32) {
    %c0_i32 = arith.constant 0 : i32
    %c0_i32_0 = arith.constant 0 : i32
    %c0_i32_1 = arith.constant 0 : i32
    return %c0_i32, %c0_i32_0 : i32, i32
  }
  func.func @transform_14(%arg0: i32) -> (i32, i32) {
    %c0_i32 = arith.constant 0 : i32
    %c0_i32_0 = arith.constant 0 : i32
    %c0_i32_1 = arith.constant 0 : i32
    return %c0_i32, %c0_i32_0 : i32, i32
  }
  func.func @transform_15(%arg0: i32) -> (i32, i32) {
    %c0_i32 = arith.constant 0 : i32
    %c0_i32_0 = arith.constant 0 : i32
    return %arg0, %c0_i32 : i32, i32
  }
}

</mosaic_0001>

<llo_original>
// kernel: physics_generator.1
$region0: #{physics_generator.1}
  #allocation0 [shape = 'u32[]', space=smem, size = 0x4, offset = 0x4, fixed_abs, tag = 'smem constant byte address 0x4 - core index']
  #allocation1 [shape = 'u32[144,128]{1,0:T(1,128)}', space=vmem, size = 0x12000, scoped, tag = 'internal scratch']
  %s0 = inlined_call_operand.vmem [shape: bf16[64,128], index: 0, kind: input, shape index: {}]
  %s1 = inlined_call_operand.vmem [shape: bf16[128,256], index: 1, kind: input, shape index: {}]
  %s2 = inlined_call_operand.vmem [shape: f32[1,256], index: 2, kind: input, shape index: {}]
  %s3 = inlined_call_operand.vmem [shape: f32[1,256], index: 3, kind: input, shape index: {}]
  %s4 = inlined_call_operand.vmem [shape: f32[1,256], index: 4, kind: input, shape index: {}]
  %s5 = inlined_call_operand.hbm [shape: bf16[256,512], index: 5, kind: input, shape index: {}]
  %s6 = inlined_call_operand.vmem [shape: f32[1,512], index: 6, kind: input, shape index: {}]
  %s7 = inlined_call_operand.vmem [shape: f32[1,512], index: 7, kind: input, shape index: {}]
  %s8 = inlined_call_operand.vmem [shape: f32[1,512], index: 8, kind: input, shape index: {}]
  %s9 = inlined_call_operand.hbm [shape: bf16[512,256], index: 9, kind: input, shape index: {}]
  %s10 = inlined_call_operand.vmem [shape: f32[1,256], index: 10, kind: input, shape index: {}]
  %s11 = inlined_call_operand.vmem [shape: f32[1,256], index: 11, kind: input, shape index: {}]
  %s12 = inlined_call_operand.vmem [shape: f32[1,256], index: 12, kind: input, shape index: {}]
  %s13 = inlined_call_operand.hbm [shape: bf16[256,128], index: 13, kind: input, shape index: {}]
  %s14 = inlined_call_operand.vmem [shape: f32[1,128], index: 14, kind: input, shape index: {}]
  %s15 = inlined_call_operand.vmem [shape: f32[64,128], index: 15, kind: output, shape index: {}]
  %s16 = sld [smem:[#allocation0]]
  $region105: #{physics_generator.1} parent=0
    _
  %s18 = ssub.s32 1, %s16
  %s19 = scalar_select 0, %s18, %s16
  $region1: #{physics_generator.1} parent=0
    #allocation2 [shape = 'u8[262144]{0}', space=vmem, size = 0x40000, scoped, tag = 'input window, operand 5, single buffered']
    #allocation3 [shape = 's32[2]{0}', space=sflag, size = 0x8, scoped, tag = 'scoped memory for physics_generator.1']
    #allocation4 [shape = 'u8[262144]{0}', space=vmem, size = 0x40000, scoped, tag = 'input window, operand 9, single buffered']
    #allocation5 [shape = 's32[1]{0}', space=sflag, size = 0x4, scoped, tag = 'scoped memory for physics_generator.1']
    #allocation6 [shape = 'u8[65536]{0}', space=vmem, size = 0x10000, scoped, tag = 'input window, operand 13, single buffered']
    %20 = vsyncpa [#allocation3], 0
    %21 = vsyncpa [#allocation5], 0
    loop: start=0, step=1, limit=4
    $region2: #{physics_generator.1} parent=1 // loop_pre_header
      _
    $region3: #{physics_generator.1} parent=1 // loop_header
      %s23 = sphi 0, %s27
      %p24 = scmp.ge.s32.totalorder %s23, 4
      %s33 = sphi 0, %s35
      %s36 = sphi 0, %s33
      %s37 = sphi 0, %s36
      %s53 = sphi 0, %s37
      %s57 = sphi 0, %s57
      %s59 = sphi 0, %s57
      %s60 = sphi 0, %s59
      %s74 = sphi 0, %s60
      %s78 = sphi 0, %s78
      %s80 = sphi 0, %s78
      %s81 = sphi 0, %s80
      %s95 = sphi 0, %s81
      %s99 = sphi 0, %s99
      %s101 = sphi 0, %s99
      %s102 = sphi 0, %s101
      %s116 = sphi 0, %s102
      %s120 = sphi 0, %s120
      %s122 = sphi 0, %s120
      %s123 = sphi 0, %s122
      %s137 = sphi 0, %s123
      %s141 = sphi 0, %s141
      %s143 = sphi 0, %s141
      %s144 = sphi 0, %s143
      %s158 = sphi 0, %s144
      %s162 = sphi 0, %s162
      %s164 = sphi 0, %s162
      %s165 = sphi 0, %s164
      %s179 = sphi 0, %s165
      %s183 = sphi 0, %s183
      %s185 = sphi 0, %s183
      %s186 = sphi 0, %s185
      %s200 = sphi 0, %s186
      %s204 = sphi 0, %s204
      %s206 = sphi 0, %s204
      %s207 = sphi 0, %s206
      %s221 = sphi 0, %s207
      %s225 = sphi 0, %s225
      %s227 = sphi 0, %s225
      %s228 = sphi 0, %s227
      %s242 = sphi 0, %s228
      %s246 = sphi 0, %s246
      %s248 = sphi 0, %s246
      %s249 = sphi 0, %s248
      %s263 = sphi 0, %s249
      %s267 = sphi 0, %s267
      %s269 = sphi 0, %s267
      %s270 = sphi 0, %s269
      %s284 = sphi 0, %s270
      %s288 = sphi 0, %s288
      %s290 = sphi 0, %s288
      %s291 = sphi 0, %s290
      %s305 = sphi 0, %s291
      %s309 = sphi 0, %s309
      %s311 = sphi 0, %s309
      %s312 = sphi 0, %s311
      %s326 = sphi 0, %s312
      %s330 = sphi 0, %s330
      %s332 = sphi 0, %s330
      %s333 = sphi 0, %s332
      %s347 = sphi 0, %s333
      %s353 = sphi 0, %s355
      %s356 = sphi 0, %s353
      %s357 = sphi 0, %s356
      %s373 = sphi 0, %s357
    $region4: #{physics_generator.1} parent=1 // loop_header_branch
      %26 = sbr.rel (%p24) target = $region8
    $region5: #{physics_generator.1} parent=1 // loop_body
      %s28 = ssub.s32 %s23, 1
      %s29 = ssub.s32 %s23, 2
      %s30 = sadd.s32 %s23, 1
      %s31 = ssub.s32 %s23, %s30
      %p32 = scmp.eq.s32.totalorder %s31, 0
      %s34 = sadd.s32 %s33, 1
      %s35 = scalar_select %p32, %s33, %s34
      %p38 = pneg %p32
      %p39 = scmp.eq.s32.totalorder %s23, 1
      %p40 = por %p38, %p39
      %p41 = scmp.ne.s32.totalorder %s33, %s36
      %p42 = scmp.eq.s32.totalorder %s23, 0
      %p43 = por %p41, %p42
      %p44 = scmp.ne.s32.totalorder %s33, %s36
      %p45 = scmp.eq.s32.totalorder %s28, 1
      %p46 = por %p44, %p45
      %p47 = scmp.ne.s32.totalorder %s36, %s37
      %p48 = scmp.eq.s32.totalorder %s28, 0
      %p49 = por %p47, %p48
      %p50 = scmp.ne.s32.totalorder %s36, %s37
      %p51 = scmp.eq.s32.totalorder %s29, 1
      %p52 = por %p50, %p51
      %p54 = scmp.ne.s32.totalorder %s37, %s53
      %p55 = scmp.eq.s32.totalorder %s29, 0
      %p56 = por %p54, %p55
      %s58 = sadd.s32 %s57, 1
      %p61 = scmp.eq.s32.totalorder %s23, 1
      %p62 = scmp.ne.s32.totalorder %s57, %s59
      %p63 = scmp.eq.s32.totalorder %s23, 0
      %p64 = por %p62, %p63
      %p65 = scmp.ne.s32.totalorder %s57, %s59
      %p66 = scmp.eq.s32.totalorder %s28, 1
      %p67 = por %p65, %p66
      %p68 = scmp.ne.s32.totalorder %s59, %s60
      %p69 = scmp.eq.s32.totalorder %s28, 0
      %p70 = por %p68, %p69
      %p71 = scmp.ne.s32.totalorder %s59, %s60
      %p72 = scmp.eq.s32.totalorder %s29, 1
      %p73 = por %p71, %p72
      %p75 = scmp.ne.s32.totalorder %s60, %s74
      %p76 = scmp.eq.s32.totalorder %s29, 0
      %p77 = por %p75, %p76
      %s79 = sadd.s32 %s78, 1
      %p82 = scmp.eq.s32.totalorder %s23, 1
      %p83 = scmp.ne.s32.totalorder %s78, %s80
      %p84 = scmp.eq.s32.totalorder %s23, 0
      %p85 = por %p83, %p84
      %p86 = scmp.ne.s32.totalorder %s78, %s80
      %p87 = scmp.eq.s32.totalorder %s28, 1
      %p88 = por %p86, %p87
      %p89 = scmp.ne.s32.totalorder %s80, %s81
      %p90 = scmp.eq.s32.totalorder %s28, 0
      %p91 = por %p89, %p90
      %p92 = scmp.ne.s32.totalorder %s80, %s81
      %p93 = scmp.eq.s32.totalorder %s29, 1
      %p94 = por %p92, %p93
      %p96 = scmp.ne.s32.totalorder %s81, %s95
      %p97 = scmp.eq.s32.totalorder %s29, 0
      %p98 = por %p96, %p97
      %s100 = sadd.s32 %s99, 1
      %p103 = scmp.eq.s32.totalorder %s23, 1
      %p104 = scmp.ne.s32.totalorder %s99, %s101
      %p105 = scmp.eq.s32.totalorder %s23, 0
      %p106 = por %p104, %p105
      %p107 = scmp.ne.s32.totalorder %s99, %s101
      %p108 = scmp.eq.s32.totalorder %s28, 1
      %p109 = por %p107, %p108
      %p110 = scmp.ne.s32.totalorder %s101, %s102
      %p111 = scmp.eq.s32.totalorder %s28, 0
      %p112 = por %p110, %p111
      %p113 = scmp.ne.s32.totalorder %s101, %s102
      %p114 = scmp.eq.s32.totalorder %s29, 1
      %p115 = por %p113, %p114
      %p117 = scmp.ne.s32.totalorder %s102, %s116
      %p118 = scmp.eq.s32.totalorder %s29, 0
      %p119 = por %p117, %p118
      %s121 = sadd.s32 %s120, 1
      %p124 = scmp.eq.s32.totalorder %s23, 1
      %p125 = scmp.ne.s32.totalorder %s120, %s122
      %p126 = scmp.eq.s32.totalorder %s23, 0
      %p127 = por %p125, %p126
      %p128 = scmp.ne.s32.totalorder %s120, %s122
      %p129 = scmp.eq.s32.totalorder %s28, 1
      %p130 = por %p128, %p129
      %p131 = scmp.ne.s32.totalorder %s122, %s123
      %p132 = scmp.eq.s32.totalorder %s28, 0
      %p133 = por %p131, %p132
      %p134 = scmp.ne.s32.totalorder %s122, %s123
      %p135 = scmp.eq.s32.totalorder %s29, 1
      %p136 = por %p134, %p135
      %p138 = scmp.ne.s32.totalorder %s123, %s137
      %p139 = scmp.eq.s32.totalorder %s29, 0
      %p140 = por %p138, %p139
      %s142 = sadd.s32 %s141, 1
      %p145 = scmp.eq.s32.totalorder %s23, 1
      %p146 = scmp.ne.s32.totalorder %s141, %s143
      %p147 = scmp.eq.s32.totalorder %s23, 0
      %p148 = por %p146, %p147
      %p149 = scmp.ne.s32.totalorder %s141, %s143
      %p150 = scmp.eq.s32.totalorder %s28, 1
      %p151 = por %p149, %p150
      %p152 = scmp.ne.s32.totalorder %s143, %s144
      %p153 = scmp.eq.s32.totalorder %s28, 0
      %p154 = por %p152, %p153
      %p155 = scmp.ne.s32.totalorder %s143, %s144
      %p156 = scmp.eq.s32.totalorder %s29, 1
      %p157 = por %p155, %p156
      %p159 = scmp.ne.s32.totalorder %s144, %s158
      %p160 = scmp.eq.s32.totalorder %s29, 0
      %p161 = por %p159, %p160
      %s163 = sadd.s32 %s162, 1
      %p166 = scmp.eq.s32.totalorder %s23, 1
      %p167 = scmp.ne.s32.totalorder %s162, %s164
      %p168 = scmp.eq.s32.totalorder %s23, 0
      %p169 = por %p167, %p168
      %p170 = scmp.ne.s32.totalorder %s162, %s164
      %p171 = scmp.eq.s32.totalorder %s28, 1
      %p172 = por %p170, %p171
      %p173 = scmp.ne.s32.totalorder %s164, %s165
      %p174 = scmp.eq.s32.totalorder %s28, 0
      %p175 = por %p173, %p174
      %p176 = scmp.ne.s32.totalorder %s164, %s165
      %p177 = scmp.eq.s32.totalorder %s29, 1
      %p178 = por %p176, %p177
      %p180 = scmp.ne.s32.totalorder %s165, %s179
      %p181 = scmp.eq.s32.totalorder %s29, 0
      %p182 = por %p180, %p181
      %s184 = sadd.s32 %s183, 1
      %p187 = scmp.eq.s32.totalorder %s23, 1
      %p188 = scmp.ne.s32.totalorder %s183, %s185
      %p189 = scmp.eq.s32.totalorder %s23, 0
      %p190 = por %p188, %p189
      %p191 = scmp.ne.s32.totalorder %s183, %s185
      %p192 = scmp.eq.s32.totalorder %s28, 1
      %p193 = por %p191, %p192
      %p194 = scmp.ne.s32.totalorder %s185, %s186
      %p195 = scmp.eq.s32.totalorder %s28, 0
      %p196 = por %p194, %p195
      %p197 = scmp.ne.s32.totalorder %s185, %s186
      %p198 = scmp.eq.s32.totalorder %s29, 1
      %p199 = por %p197, %p198
      %p201 = scmp.ne.s32.totalorder %s186, %s200
      %p202 = scmp.eq.s32.totalorder %s29, 0
      %p203 = por %p201, %p202
      %s205 = sadd.s32 %s204, 1
      %p208 = scmp.eq.s32.totalorder %s23, 1
      %p209 = scmp.ne.s32.totalorder %s204, %s206
      %p210 = scmp.eq.s32.totalorder %s23, 0
      %p211 = por %p209, %p210
      %p212 = scmp.ne.s32.totalorder %s204, %s206
      %p213 = scmp.eq.s32.totalorder %s28, 1
      %p214 = por %p212, %p213
      %p215 = scmp.ne.s32.totalorder %s206, %s207
      %p216 = scmp.eq.s32.totalorder %s28, 0
      %p217 = por %p215, %p216
      %p218 = scmp.ne.s32.totalorder %s206, %s207
      %p219 = scmp.eq.s32.totalorder %s29, 1
      %p220 = por %p218, %p219
      %p222 = scmp.ne.s32.totalorder %s207, %s221
      %p223 = scmp.eq.s32.totalorder %s29, 0
      %p224 = por %p222, %p223
      %s226 = sadd.s32 %s225, 1
      %p229 = scmp.eq.s32.totalorder %s23, 1
      %p230 = scmp.ne.s32.totalorder %s225, %s227
      %p231 = scmp.eq.s32.totalorder %s23, 0
      %p232 = por %p230, %p231
      %p233 = scmp.ne.s32.totalorder %s225, %s227
      %p234 = scmp.eq.s32.totalorder %s28, 1
      %p235 = por %p233, %p234
      %p236 = scmp.ne.s32.totalorder %s227, %s228
      %p237 = scmp.eq.s32.totalorder %s28, 0
      %p238 = por %p236, %p237
      %p239 = scmp.ne.s32.totalorder %s227, %s228
      %p240 = scmp.eq.s32.totalorder %s29, 1
      %p241 = por %p239, %p240
      %p243 = scmp.ne.s32.totalorder %s228, %s242
      %p244 = scmp.eq.s32.totalorder %s29, 0
      %p245 = por %p243, %p244
      %s247 = sadd.s32 %s246, 1
      %p250 = scmp.eq.s32.totalorder %s23, 1
      %p251 = scmp.ne.s32.totalorder %s246, %s248
      %p252 = scmp.eq.s32.totalorder %s23, 0
      %p253 = por %p251, %p252
      %p254 = scmp.ne.s32.totalorder %s246, %s248
      %p255 = scmp.eq.s32.totalorder %s28, 1
      %p256 = por %p254, %p255
      %p257 = scmp.ne.s32.totalorder %s248, %s249
      %p258 = scmp.eq.s32.totalorder %s28, 0
      %p259 = por %p257, %p258
      %p260 = scmp.ne.s32.totalorder %s248, %s249
      %p261 = scmp.eq.s32.totalorder %s29, 1
      %p262 = por %p260, %p261
      %p264 = scmp.ne.s32.totalorder %s249, %s263
      %p265 = scmp.eq.s32.totalorder %s29, 0
      %p266 = por %p264, %p265
      %s268 = sadd.s32 %s267, 1
      %p271 = scmp.eq.s32.totalorder %s23, 1
      %p272 = scmp.ne.s32.totalorder %s267, %s269
      %p273 = scmp.eq.s32.totalorder %s23, 0
      %p274 = por %p272, %p273
      %p275 = scmp.ne.s32.totalorder %s267, %s269
      %p276 = scmp.eq.s32.totalorder %s28, 1
      %p277 = por %p275, %p276
      %p278 = scmp.ne.s32.totalorder %s269, %s270
      %p279 = scmp.eq.s32.totalorder %s28, 0
      %p280 = por %p278, %p279
      %p281 = scmp.ne.s32.totalorder %s269, %s270
      %p282 = scmp.eq.s32.totalorder %s29, 1
      %p283 = por %p281, %p282
      %p285 = scmp.ne.s32.totalorder %s270, %s284
      %p286 = scmp.eq.s32.totalorder %s29, 0
      %p287 = por %p285, %p286
      %s289 = sadd.s32 %s288, 1
      %p292 = scmp.eq.s32.totalorder %s23, 1
      %p293 = scmp.ne.s32.totalorder %s288, %s290
      %p294 = scmp.eq.s32.totalorder %s23, 0
      %p295 = por %p293, %p294
      %p296 = scmp.ne.s32.totalorder %s288, %s290
      %p297 = scmp.eq.s32.totalorder %s28, 1
      %p298 = por %p296, %p297
      %p299 = scmp.ne.s32.totalorder %s290, %s291
      %p300 = scmp.eq.s32.totalorder %s28, 0
      %p301 = por %p299, %p300
      %p302 = scmp.ne.s32.totalorder %s290, %s291
      %p303 = scmp.eq.s32.totalorder %s29, 1
      %p304 = por %p302, %p303
      %p306 = scmp.ne.s32.totalorder %s291, %s305
      %p307 = scmp.eq.s32.totalorder %s29, 0
      %p308 = por %p306, %p307
      %s310 = sadd.s32 %s309, 1
      %p313 = scmp.eq.s32.totalorder %s23, 1
      %p314 = scmp.ne.s32.totalorder %s309, %s311
      %p315 = scmp.eq.s32.totalorder %s23, 0
      %p316 = por %p314, %p315
      %p317 = scmp.ne.s32.totalorder %s309, %s311
      %p318 = scmp.eq.s32.totalorder %s28, 1
      %p319 = por %p317, %p318
      %p320 = scmp.ne.s32.totalorder %s311, %s312
      %p321 = scmp.eq.s32.totalorder %s28, 0
      %p322 = por %p320, %p321
      %p323 = scmp.ne.s32.totalorder %s311, %s312
      %p324 = scmp.eq.s32.totalorder %s29, 1
      %p325 = por %p323, %p324
      %p327 = scmp.ne.s32.totalorder %s312, %s326
      %p328 = scmp.eq.s32.totalorder %s29, 0
      %p329 = por %p327, %p328
      %s331 = sadd.s32 %s330, 1
      %p334 = scmp.eq.s32.totalorder %s23, 1
      %p335 = scmp.ne.s32.totalorder %s330, %s332
      %p336 = scmp.eq.s32.totalorder %s23, 0
      %p337 = por %p335, %p336
      %p338 = scmp.ne.s32.totalorder %s330, %s332
      %p339 = scmp.eq.s32.totalorder %s28, 1
      %p340 = por %p338, %p339
      %p341 = scmp.ne.s32.totalorder %s332, %s333
      %p342 = scmp.eq.s32.totalorder %s28, 0
      %p343 = por %p341, %p342
      %p344 = scmp.ne.s32.totalorder %s332, %s333
      %p345 = scmp.eq.s32.totalorder %s29, 1
      %p346 = por %p344, %p345
      %p348 = scmp.ne.s32.totalorder %s333, %s347
      %p349 = scmp.eq.s32.totalorder %s29, 0
      %p350 = por %p348, %p349
      %s351 = ssub.s32 %s23, %s30
      %p352 = scmp.eq.s32.totalorder %s351, 0
      %s354 = sadd.s32 %s353, 1
      %s355 = scalar_select %p352, %s353, %s354
      %p358 = pneg %p352
      %p359 = scmp.eq.s32.totalorder %s23, 1
      %p360 = por %p358, %p359
      %p361 = scmp.ne.s32.totalorder %s353, %s356
      %p362 = scmp.eq.s32.totalorder %s23, 0
      %p363 = por %p361, %p362
      %p364 = scmp.ne.s32.totalorder %s353, %s356
      %p365 = scmp.eq.s32.totalorder %s28, 1
      %p366 = por %p364, %p365
      %p367 = scmp.ne.s32.totalorder %s356, %s357
      %p368 = scmp.eq.s32.totalorder %s28, 0
      %p369 = por %p367, %p368
      %p370 = scmp.ne.s32.totalorder %s356, %s357
      %p371 = scmp.eq.s32.totalorder %s29, 1
      %p372 = por %p370, %p371
      %p374 = scmp.ne.s32.totalorder %s357, %s373
      %p375 = scmp.eq.s32.totalorder %s29, 0
      %p376 = por %p374, %p375
      %p377 = scmp.le.s32.totalorder 1, %s23
      %p378 = scmp.lt.s32.totalorder %s23, 3
      %p379 = pnand %p377, %p378
      %p380 = pneg %p379
      // Predicated region
      $region9: #{physics_generator.1} parent=5 // pred_check
        _
      $region10: #{physics_generator.1} parent=5 // pred_check_branch
        %382 = sbr.rel (%p379) target = $region12
      $region11: #{physics_generator.1} parent=5 // pred_region
        %s383 = ssub.s32 %s23, 1
        // Predicated region
        $region13: #{physics_generator.1} parent=11 // pred_check
          %p384 = pneg %p70
        $region14: #{physics_generator.1} parent=11 // pred_check_branch
          %386 = sbr.rel (%p384) target = $region16
        $region15: #{physics_generator.1} parent=11 // pred_region
          _
        $region16: #{physics_generator.1} parent=11 // pred_fallthru
          _
        // Predicated region
        $region17: #{physics_generator.1} parent=11 // pred_check
          %p387 = pneg %p91
        $region18: #{physics_generator.1} parent=11 // pred_check_branch
          %389 = sbr.rel (%p387) target = $region20
        $region19: #{physics_generator.1} parent=11 // pred_region
          _
        $region20: #{physics_generator.1} parent=11 // pred_fallthru
          _
        // Predicated region
        $region21: #{physics_generator.1} parent=11 // pred_check
          %p390 = pneg %p112
        $region22: #{physics_generator.1} parent=11 // pred_check_branch
          %392 = sbr.rel (%p390) target = $region24
        $region23: #{physics_generator.1} parent=11 // pred_region
          _
        $region24: #{physics_generator.1} parent=11 // pred_fallthru
          _
        // Predicated region
        $region25: #{physics_generator.1} parent=11 // pred_check
          %p393 = pneg %p133
        $region26: #{physics_generator.1} parent=11 // pred_check_branch
          %395 = sbr.rel (%p393) target = $region28
        $region27: #{physics_generator.1} parent=11 // pred_region
          _
        $region28: #{physics_generator.1} parent=11 // pred_fallthru
          _
        // Predicated region
        $region29: #{physics_generator.1} parent=11 // pred_check
          %p396 = pneg %p154
        $region30: #{physics_generator.1} parent=11 // pred_check_branch
          %398 = sbr.rel (%p396) target = $region32
        $region31: #{physics_generator.1} parent=11 // pred_region
          %s400 = ssub.s32 8192, 8192
          %401 = vsyncadd [#allocation3], %s400
          %s402 = sshll.u32 [#allocation2], 4
          %s403 = int_to_ptr.vmem [resolvable:$true] %s402
          %408 = dma.hbm_to_vmem [thread:$0]  %s5, 8192, %s403, [#allocation3], 256, 256, 16
        $region32: #{physics_generator.1} parent=11 // pred_fallthru
          _
        // Predicated region
        $region33: #{physics_generator.1} parent=11 // pred_check
          %p409 = pneg %p175
        $region34: #{physics_generator.1} parent=11 // pred_check_branch
          %411 = sbr.rel (%p409) target = $region36
        $region35: #{physics_generator.1} parent=11 // pred_region
          _
        $region36: #{physics_generator.1} parent=11 // pred_fallthru
          _
        // Predicated region
        $region37: #{physics_generator.1} parent=11 // pred_check
          %p412 = pneg %p196
        $region38: #{physics_generator.1} parent=11 // pred_check_branch
          %414 = sbr.rel (%p412) target = $region40
        $region39: #{physics_generator.1} parent=11 // pred_region
          _
        $region40: #{physics_generator.1} parent=11 // pred_fallthru
          _
        // Predicated region
        $region41: #{physics_generator.1} parent=11 // pred_check
          %p415 = pneg %p217
        $region42: #{physics_generator.1} parent=11 // pred_check_branch
          %417 = sbr.rel (%p415) target = $region44
        $region43: #{physics_generator.1} parent=11 // pred_region
          _
        $region44: #{physics_generator.1} parent=11 // pred_fallthru
          _
        // Predicated region
        $region45: #{physics_generator.1} parent=11 // pred_check
          %p418 = pneg %p238
        $region46: #{physics_generator.1} parent=11 // pred_check_branch
          %420 = sbr.rel (%p418) target = $region48
        $region47: #{physics_generator.1} parent=11 // pred_region
          %s422 = ssub.s32 8192, 8192
          %423 = vsyncadd [#allocation5], %s422
          %s424 = sshll.u32 [#allocation4], 4
          %s425 = int_to_ptr.vmem [resolvable:$true] %s424
          %430 = dma.hbm_to_vmem [thread:$0]  %s9, 8192, %s425, [#allocation5], 128, 128, 8
        $region48: #{physics_generator.1} parent=11 // pred_fallthru
          _
        // Predicated region
        $region49: #{physics_generator.1} parent=11 // pred_check
          %p431 = pneg %p259
        $region50: #{physics_generator.1} parent=11 // pred_check_branch
          %433 = sbr.rel (%p431) target = $region52
        $region51: #{physics_generator.1} parent=11 // pred_region
          _
        $region52: #{physics_generator.1} parent=11 // pred_fallthru
          _
        // Predicated region
        $region53: #{physics_generator.1} parent=11 // pred_check
          %p434 = pneg %p280
        $region54: #{physics_generator.1} parent=11 // pred_check_branch
          %436 = sbr.rel (%p434) target = $region56
        $region55: #{physics_generator.1} parent=11 // pred_region
          _
        $region56: #{physics_generator.1} parent=11 // pred_fallthru
          _
        // Predicated region
        $region57: #{physics_generator.1} parent=11 // pred_check
          %p437 = pneg %p301
        $region58: #{physics_generator.1} parent=11 // pred_check_branch
          %439 = sbr.rel (%p437) target = $region60
        $region59: #{physics_generator.1} parent=11 // pred_region
          _
        $region60: #{physics_generator.1} parent=11 // pred_fallthru
          _
        // Predicated region
        $region61: #{physics_generator.1} parent=11 // pred_check
          %p440 = pneg %p322
        $region62: #{physics_generator.1} parent=11 // pred_check_branch
          %442 = sbr.rel (%p440) target = $region64
        $region63: #{physics_generator.1} parent=11 // pred_region
          %s444 = ssub.s32 2048, 2048
          %445 = vsyncadd [#allocation5], %s444
          %s446 = sshll.u32 [#allocation6], 4
          %s447 = int_to_ptr.vmem [resolvable:$true] %s446
          %452 = dma.hbm_to_vmem [thread:$0]  %s13, 2048, %s447, [#allocation5], 64, 64, 4
        $region64: #{physics_generator.1} parent=11 // pred_fallthru
          _
        // Predicated region
        $region65: #{physics_generator.1} parent=11 // pred_check
          %p453 = pneg %p343
        $region66: #{physics_generator.1} parent=11 // pred_check_branch
          %455 = sbr.rel (%p453) target = $region68
        $region67: #{physics_generator.1} parent=11 // pred_region
          _
        $region68: #{physics_generator.1} parent=11 // pred_fallthru
          _
      $region12: #{physics_generator.1} parent=5 // pred_fallthru
        _
      %p456 = scmp.lt.s32.totalorder %s23, 2
      // Predicated region
      $region69: #{physics_generator.1} parent=5 // pred_check
        %p457 = pneg %p456
      $region70: #{physics_generator.1} parent=5 // pred_check_branch
        %459 = sbr.rel (%p457) target = $region72
      $region71: #{physics_generator.1} parent=5 // pred_region
        // Predicated region
        $region73: #{physics_generator.1} parent=71 // pred_check
          %p460 = pneg %p43
        $region74: #{physics_generator.1} parent=71 // pred_check_branch
          %462 = sbr.rel (%p460) target = $region76
        $region75: #{physics_generator.1} parent=71 // pred_region
          %s463 = smul.u32 4, %s23
          %p464 = scmp.lt.s32.totalorder %s463, 7
          %s465 = scalar_select %p464, %s463, 7
          %s466 = smul.addr %s465, 4
          %s467 = scalar_lea.vmem %s0, %s466
          %s468 = smul.u32 4, %s23
        $region76: #{physics_generator.1} parent=71 // pred_fallthru
          _
      $region72: #{physics_generator.1} parent=5 // pred_fallthru
        _
      %p469 = scmp.le.s32.totalorder 1, %s23
      %p470 = scmp.lt.s32.totalorder %s23, 3
      %p471 = pnand %p469, %p470
      %p472 = pneg %p471
      // Predicated region
      $region77: #{physics_generator.1} parent=5 // pred_check
        _
      $region78: #{physics_generator.1} parent=5 // pred_check_branch
        %474 = sbr.rel (%p471) target = $region80
      $region79: #{physics_generator.1} parent=5 // pred_region
        %s475 = ssub.s32 %s23, 1
        // Predicated region
        $region81: #{physics_generator.1} parent=79 // pred_check
          %p476 = pneg %p154
        $region82: #{physics_generator.1} parent=79 // pred_check_branch
          %478 = sbr.rel (%p476) target = $region84
        $region83: #{physics_generator.1} parent=79 // pred_region
          %479 = dma.done [#allocation3], 8192
        $region84: #{physics_generator.1} parent=79 // pred_fallthru
          _
        // Predicated region
        $region85: #{physics_generator.1} parent=79 // pred_check
          %p480 = pneg %p238
        $region86: #{physics_generator.1} parent=79 // pred_check_branch
          %482 = sbr.rel (%p480) target = $region88
        $region87: #{physics_generator.1} parent=79 // pred_region
          %483 = dma.done [#allocation5], 8192
        $region88: #{physics_generator.1} parent=79 // pred_fallthru
          _
        // Predicated region
        $region89: #{physics_generator.1} parent=79 // pred_check
          %p484 = pneg %p322
        $region90: #{physics_generator.1} parent=79 // pred_check_branch
          %486 = sbr.rel (%p484) target = $region92
        $region91: #{physics_generator.1} parent=79 // pred_region
          %487 = dma.done [#allocation5], 2048
        $region92: #{physics_generator.1} parent=79 // pred_fallthru
          _
        %s488 = smul.u32 4, %s28
        %p489 = scmp.lt.s32.totalorder %s488, 7
        %s490 = scalar_select %p489, %s488, 7
        %s491 = smul.addr %s490, 4
        %s492 = scalar_lea.vmem %s0, %s491
        %p493 = pneg %p49
        %p494 = pneg %p46
        %p495 = pneg %p70
        %p496 = pneg %p67
        %p497 = pneg %p91
        %p498 = pneg %p88
        %p499 = pneg %p112
        %p500 = pneg %p109
        %p501 = pneg %p133
        %p502 = pneg %p130
        %p503 = pneg %p154
        %p504 = pneg %p151
        %p505 = pneg %p175
        %p506 = pneg %p172
        %p507 = pneg %p196
        %p508 = pneg %p193
        %p509 = pneg %p217
        %p510 = pneg %p214
        %p511 = pneg %p238
        %p512 = pneg %p235
        %p513 = pneg %p259
        %p514 = pneg %p256
        %p515 = pneg %p280
        %p516 = pneg %p277
        %p517 = pneg %p301
        %p518 = pneg %p298
        %p519 = pneg %p322
        %p520 = pneg %p319
        %p521 = pneg %p343
        %p522 = pneg %p340
        %p523 = pneg %p369
        %p524 = pneg %p366
        %s525 = smul.u32 4, %s28
        %p526 = scmp.lt.s32.totalorder %s525, 7
        %s527 = scalar_select %p526, %s525, 7
        %s528 = smul.addr %s527, 8
        %s529 = scalar_lea.vmem %s15, %s528
        %s530 = smul.u32 4, %s28
        %p531 = scmp.lt.s32.totalorder %s530, 7
        %s532 = scalar_select %p531, %s530, 7
        %s533 = smul.addr %s532, 4
        %s534 = scalar_lea.vmem %s0, %s533
        %s535 = smul.u32 4, %s28
        %s536 = smul.u32 4, %s28
        %p537 = scmp.lt.s32.totalorder %s536, 7
        %s538 = scalar_select %p537, %s536, 7
        %s539 = smul.addr %s538, 8
        %s540 = scalar_lea.vmem %s15, %s539
        %s541 = smul.u32 4, %s28
        %v543 = vld [vmem:[%s534] sm:$0xf]
        %v544 = vld [vmem:[%s534 + $0x4] sm:$0xf]
        %v545 = vld [vmem:[%s534 + $0x8] sm:$0xf]
        %v546 = vld [vmem:[%s534 + $0xc] sm:$0xf]
        %v547 = vld [vmem:[%s1] sm:$0xff]
        %v548 = vld [vmem:[%s1 + $0x8] sm:$0xff]
        %v549 = vld [vmem:[%s1 + $0x10] sm:$0xff]
        %v550 = vld [vmem:[%s1 + $0x18] sm:$0xff]
        %v551 = vld [vmem:[%s1 + $0x20] sm:$0xff]
        %v552 = vld [vmem:[%s1 + $0x28] sm:$0xff]
        %v553 = vld [vmem:[%s1 + $0x30] sm:$0xff]
        %v554 = vld [vmem:[%s1 + $0x38] sm:$0xff]
        %v555 = vld [vmem:[%s1 + $0x40] sm:$0xff]
        %v556 = vld [vmem:[%s1 + $0x48] sm:$0xff]
        %v557 = vld [vmem:[%s1 + $0x50] sm:$0xff]
        %v558 = vld [vmem:[%s1 + $0x58] sm:$0xff]
        %v559 = vld [vmem:[%s1 + $0x60] sm:$0xff]
        %v560 = vld [vmem:[%s1 + $0x68] sm:$0xff]
        %v561 = vld [vmem:[%s1 + $0x70] sm:$0xff]
        %v562 = vld [vmem:[%s1 + $0x78] sm:$0xff]
        %v563 = vld [vmem:[%s2] sm:$0x3]
        %v565 = vlaneseq
        %v566 = vshrl.u32 %v565, 7
        %v567 = vsub.s32 0, %v566
        %v568 = vrot.slane %v563, %v567
        %v569 = vlaneseq
        %v570 = vshrl.u32 %v569, 7
        %v571 = vsub.s32 1, %v570
        %v572 = vrot.slane %v563, %v571
        %v579 = vunpack.c.l.b16 %v543
        %v580 = vunpack.c.l.b16 %v544
        %v581 = vunpack.c.l.b16 %v545
        %v582 = vunpack.c.l.b16 %v546
        %v583 = vpack.c.b16 %v580, %v579
        %v584 = vpack.c.b16 %v582, %v581
        %v603 = vunpack.c.l.b16 %v547
        %v604 = vunpack.c.h.b16 %v547
        %v605 = vunpack.c.l.b16 %v548
        %v606 = vunpack.c.h.b16 %v548
        %v607 = vunpack.c.l.b16 %v549
        %v608 = vunpack.c.h.b16 %v549
        %v609 = vunpack.c.l.b16 %v550
        %v610 = vunpack.c.h.b16 %v550
        %v611 = vunpack.c.l.b16 %v551
        %v612 = vunpack.c.h.b16 %v551
        %v613 = vunpack.c.l.b16 %v552
        %v614 = vunpack.c.h.b16 %v552
        %v615 = vunpack.c.l.b16 %v553
        %v616 = vunpack.c.h.b16 %v553
        %v617 = vunpack.c.l.b16 %v554
        %v618 = vunpack.c.h.b16 %v554
        %v619 = vunpack.c.l.b16 %v555
        %v620 = vunpack.c.h.b16 %v555
        %v621 = vunpack.c.l.b16 %v556
        %v622 = vunpack.c.h.b16 %v556
        %v623 = vunpack.c.l.b16 %v557
        %v624 = vunpack.c.h.b16 %v557
        %v625 = vunpack.c.l.b16 %v558
        %v626 = vunpack.c.h.b16 %v558
        %v627 = vunpack.c.l.b16 %v559
        %v628 = vunpack.c.h.b16 %v559
        %v629 = vunpack.c.l.b16 %v560
        %v630 = vunpack.c.h.b16 %v560
        %v631 = vunpack.c.l.b16 %v561
        %v632 = vunpack.c.h.b16 %v561
        %v633 = vunpack.c.l.b16 %v562
        %v634 = vunpack.c.h.b16 %v562
        %v635 = vpack.c.b16 %v605, %v603
        %v636 = vpack.c.b16 %v606, %v604
        %v637 = vpack.c.b16 %v609, %v607
        %v638 = vpack.c.b16 %v610, %v608
        %v639 = vpack.c.b16 %v613, %v611
        %v640 = vpack.c.b16 %v614, %v612
        %v641 = vpack.c.b16 %v617, %v615
        %v642 = vpack.c.b16 %v618, %v616
        %v643 = vpack.c.b16 %v621, %v619
        %v644 = vpack.c.b16 %v622, %v620
        %v645 = vpack.c.b16 %v625, %v623
        %v646 = vpack.c.b16 %v626, %v624
        %v647 = vpack.c.b16 %v629, %v627
        %v648 = vpack.c.b16 %v630, %v628
        %v649 = vpack.c.b16 %v633, %v631
        %v650 = vpack.c.b16 %v634, %v632
        %667 = vmatprep.subr.bf16.mxu0 %v636
        %668 = vmatpush1.bf16.msra.mxu0 %v635
        %669 = vmatprep.subr.bf16.mxu0 %v638
        %670 = vmatpush1.bf16.msra.mxu0 %v637
        %671 = vmatprep.subr.bf16.mxu0 %v640
        %672 = vmatpush1.bf16.msra.mxu0 %v639
        %673 = vmatprep.subr.bf16.mxu0 %v642
        %674 = vmatpush1.bf16.msra.mxu0 %v641
        %675 = vmatprep.subr.bf16.mxu0 %v644
        %676 = vmatpush1.bf16.msra.mxu0 %v643
        %677 = vmatprep.subr.bf16.mxu0 %v646
        %678 = vmatpush1.bf16.msra.mxu0 %v645
        %679 = vmatprep.subr.bf16.mxu0 %v648
        %680 = vmatpush1.bf16.msra.mxu0 %v647
        %681 = vmatprep.subr.bf16.mxu0 %v650
        %682 = vmatpush1.bf16.msra.mxu0 %v649
        %683 = vmatprep.subr.bf16.mxu0 0
        %684 = vmatpush1.bf16.msra.mxu0 0
        %685 = vmatprep.subr.bf16.mxu0 0
        %686 = vmatpush1.bf16.msra.mxu0 0
        %687 = vmatprep.subr.bf16.mxu0 0
        %688 = vmatpush1.bf16.msra.mxu0 0
        %689 = vmatprep.subr.bf16.mxu0 0
        %690 = vmatpush1.bf16.msra.mxu0 0
        %691 = vmatprep.subr.bf16.mxu0 0
        %692 = vmatpush1.bf16.msra.mxu0 0
        %693 = vmatprep.subr.bf16.mxu0 0
        %694 = vmatpush1.bf16.msra.mxu0 0
        %695 = vmatprep.subr.bf16.mxu0 0
        %696 = vmatpush1.bf16.msra.mxu0 0
        %697 = vmatprep.subr.bf16.mxu0 0
        %698 = vmatpush1.bf16.msra.mxu0 0
        %699 = vmatprep.mubr.bf16.mxu0 0
        %700 = vmatmul.mubr.bf16.gmra.mrb[0].mxu0 %v583
        %v701 = vpop.f32.mrb[0].mxu0
        %v702 = vadd.f32 %v568, %v701
        %v703 = vpop.f32.mrb[0].mxu0
        %v704 = vadd.f32 %v572, %v703
        %v705 = vpop.f32.mrb[0].mxu0
        %v706 = vadd.f32 %v568, %v705
        %v707 = vpop.f32.mrb[0].mxu0
        %v708 = vadd.f32 %v572, %v707
        %709 = vmatprep.mubr.bf16.mxu0 0
        %710 = vmatmul.mubr.bf16.gmra.mrb[0].mxu0 %v584
        %v711 = vpop.f32.mrb[0].mxu0
        %v712 = vadd.f32 %v568, %v711
        %v713 = vpop.f32.mrb[0].mxu0
        %v714 = vadd.f32 %v572, %v713
        %v715 = vpop.f32.mrb[0].mxu0
        %v716 = vadd.f32 %v568, %v715
        %v717 = vpop.f32.mrb[0].mxu0
        %v718 = vadd.f32 %v572, %v717
        %719 = vdwg.mxu0
        %v720 = vld [vmem:[%s3] sm:$0x3]
        %v721 = vld [vmem:[%s4] sm:$0x3]
        %v722 = vadd.f32 %v702, %v704
        %723 = vadd.xlane.f32.xlu0 %v722
        %v724 = vpop.xlane.xlu0 %723
        %v725 = vadd.f32 %v706, %v708
        %726 = vadd.xlane.f32.xlu0 %v725
        %v727 = vpop.xlane.xlu0 %726
        %v728 = vadd.f32 %v712, %v714
        %729 = vadd.xlane.f32.xlu0 %v728
        %v730 = vpop.xlane.xlu0 %729
        %v731 = vadd.f32 %v716, %v718
        %732 = vadd.xlane.f32.xlu0 %v731
        %v733 = vpop.xlane.xlu0 %732
        %v734 = vmul.f32 %v702, %v702
        %v735 = vmul.f32 %v704, %v704
        %v736 = vmul.f32 %v706, %v706
        %v737 = vmul.f32 %v708, %v708
        %v738 = vmul.f32 %v712, %v712
        %v739 = vmul.f32 %v714, %v714
        %v740 = vmul.f32 %v716, %v716
        %v741 = vmul.f32 %v718, %v718
        %v742 = vadd.f32 %v734, %v735
        %743 = vadd.xlane.f32.xlu0 %v742
        %v744 = vpop.xlane.xlu0 %743
        %v745 = vadd.f32 %v736, %v737
        %746 = vadd.xlane.f32.xlu0 %v745
        %v747 = vpop.xlane.xlu0 %746
        %v748 = vadd.f32 %v738, %v739
        %749 = vadd.xlane.f32.xlu0 %v748
        %v750 = vpop.xlane.xlu0 %749
        %v751 = vadd.f32 %v740, %v741
        %752 = vadd.xlane.f32.xlu0 %v751
        %v753 = vpop.xlane.xlu0 %752
        %v754 = vmul.f32 %v724, 0.00390625
        %v755 = vmul.f32 %v727, 0.00390625
        %v756 = vmul.f32 %v730, 0.00390625
        %v757 = vmul.f32 %v733, 0.00390625
        %v758 = vmul.f32 %v744, 0.00390625
        %v759 = vmul.f32 %v747, 0.00390625
        %v760 = vmul.f32 %v750, 0.00390625
        %v761 = vmul.f32 %v753, 0.00390625
        %v762 = vmul.f32 %v754, %v754
        %v763 = vmul.f32 %v755, %v755
        %v764 = vmul.f32 %v756, %v756
        %v765 = vmul.f32 %v757, %v757
        %v766 = vsub.f32 %v758, %v762
        %v767 = vsub.f32 %v759, %v763
        %v768 = vsub.f32 %v760, %v764
        %v769 = vsub.f32 %v761, %v765
        %v770 = vadd.f32 %v766, 1e-05
        %v771 = vadd.f32 %v767, 1e-05
        %v772 = vadd.f32 %v768, 1e-05
        %v773 = vadd.f32 %v769, 1e-05
        %v774 = vrsqrt.pop %v770
        %v775 = vrsqrt.pop %v771
        %v776 = vrsqrt.pop %v772
        %v777 = vrsqrt.pop %v773
        %v778 = vsub.f32 %v702, %v754
        %v779 = vsub.f32 %v704, %v754
        %v780 = vsub.f32 %v706, %v755
        %v781 = vsub.f32 %v708, %v755
        %v782 = vsub.f32 %v712, %v756
        %v783 = vsub.f32 %v714, %v756
        %v784 = vsub.f32 %v716, %v757
        %v785 = vsub.f32 %v718, %v757
        %v787 = vlaneseq
        %v788 = vshrl.u32 %v787, 7
        %v789 = vsub.s32 0, %v788
        %v790 = vrot.slane %v720, %v789
        %v791 = vlaneseq
        %v792 = vshrl.u32 %v791, 7
        %v793 = vsub.s32 1, %v792
        %v794 = vrot.slane %v720, %v793
        %v797 = vmul.f32 %v774, %v790
        %v798 = vmul.f32 %v774, %v794
        %v799 = vmul.f32 %v775, %v790
        %v800 = vmul.f32 %v775, %v794
        %v801 = vmul.f32 %v776, %v790
        %v802 = vmul.f32 %v776, %v794
        %v803 = vmul.f32 %v777, %v790
        %v804 = vmul.f32 %v777, %v794
        %v805 = vmul.f32 %v778, %v797
        %v806 = vmul.f32 %v779, %v798
        %v807 = vmul.f32 %v780, %v799
        %v808 = vmul.f32 %v781, %v800
        %v809 = vmul.f32 %v782, %v801
        %v810 = vmul.f32 %v783, %v802
        %v811 = vmul.f32 %v784, %v803
        %v812 = vmul.f32 %v785, %v804
        %v814 = vlaneseq
        %v815 = vshrl.u32 %v814, 7
        %v816 = vsub.s32 0, %v815
        %v817 = vrot.slane %v721, %v816
        %v818 = vlaneseq
        %v819 = vshrl.u32 %v818, 7
        %v820 = vsub.s32 1, %v819
        %v821 = vrot.slane %v721, %v820
        %v824 = vadd.f32 %v805, %v817
        %v825 = vadd.f32 %v806, %v821
        %v826 = vadd.f32 %v807, %v817
        %v827 = vadd.f32 %v808, %v821
        %v828 = vadd.f32 %v809, %v817
        %v829 = vadd.f32 %v810, %v821
        %v830 = vadd.f32 %v811, %v817
        %v831 = vadd.f32 %v812, %v821
        %v832 = vmul.f32 %v824, 0.2
        %v833 = vmul.f32 %v825, 0.2
        %v834 = vmul.f32 %v826, 0.2
        %v835 = vmul.f32 %v827, 0.2
        %v836 = vmul.f32 %v828, 0.2
        %v837 = vmul.f32 %v829, 0.2
        %v838 = vmul.f32 %v830, 0.2
        %v839 = vmul.f32 %v831, 0.2
        %v840 = vmax.f32 %v824, %v832
        %v841 = vmax.f32 %v825, %v833
        %v842 = vmax.f32 %v826, %v834
        %v843 = vmax.f32 %v827, %v835
        %v844 = vmax.f32 %v828, %v836
        %v845 = vmax.f32 %v829, %v837
        %v846 = vmax.f32 %v830, %v838
        %v847 = vmax.f32 %v831, %v839
        %v848 = vpack.c.bf16 %v842, %v840
        %v849 = vpack.c.bf16 %v843, %v841
        %v850 = vpack.c.bf16 %v846, %v844
        %v851 = vpack.c.bf16 %v847, %v845
        %v852 = vld [vmem:[#allocation2] sm:$0xff]
        %v853 = vld [vmem:[#allocation2 + $0x8] sm:$0xff]
        %v854 = vld [vmem:[#allocation2 + $0x10] sm:$0xff]
        %v855 = vld [vmem:[#allocation2 + $0x18] sm:$0xff]
        %v856 = vld [vmem:[#allocation2 + $0x20] sm:$0xff]
        %v857 = vld [vmem:[#allocation2 + $0x28] sm:$0xff]
        %v858 = vld [vmem:[#allocation2 + $0x30] sm:$0xff]
        %v859 = vld [vmem:[#allocation2 + $0x38] sm:$0xff]
        %v860 = vld [vmem:[#allocation2 + $0x40] sm:$0xff]
        %v861 = vld [vmem:[#allocation2 + $0x48] sm:$0xff]
        %v862 = vld [vmem:[#allocation2 + $0x50] sm:$0xff]
        %v863 = vld [vmem:[#allocation2 + $0x58] sm:$0xff]
        %v864 = vld [vmem:[#allocation2 + $0x60] sm:$0xff]
        %v865 = vld [vmem:[#allocation2 + $0x68] sm:$0xff]
        %v866 = vld [vmem:[#allocation2 + $0x70] sm:$0xff]
        %v867 = vld [vmem:[#allocation2 + $0x78] sm:$0xff]
        %v868 = vld [vmem:[#allocation2 + $0x80] sm:$0xff]
        %v869 = vld [vmem:[#allocation2 + $0x88] sm:$0xff]
        %v870 = vld [vmem:[#allocation2 + $0x90] sm:$0xff]
        %v871 = vld [vmem:[#allocation2 + $0x98] sm:$0xff]
        %v872 = vld [vmem:[#allocation2 + $0xa0] sm:$0xff]
        %v873 = vld [vmem:[#allocation2 + $0xa8] sm:$0xff]
        %v874 = vld [vmem:[#allocation2 + $0xb0] sm:$0xff]
        %v875 = vld [vmem:[#allocation2 + $0xb8] sm:$0xff]
        %v876 = vld [vmem:[#allocation2 + $0xc0] sm:$0xff]
        %v877 = vld [vmem:[#allocation2 + $0xc8] sm:$0xff]
        %v878 = vld [vmem:[#allocation2 + $0xd0] sm:$0xff]
        %v879 = vld [vmem:[#allocation2 + $0xd8] sm:$0xff]
        %v880 = vld [vmem:[#allocation2 + $0xe0] sm:$0xff]
        %v881 = vld [vmem:[#allocation2 + $0xe8] sm:$0xff]
        %v882 = vld [vmem:[#allocation2 + $0xf0] sm:$0xff]
        %v883 = vld [vmem:[#allocation2 + $0xf8] sm:$0xff]
        %v884 = vld [vmem:[#allocation2 + $0x100] sm:$0xff]
        %v885 = vld [vmem:[#allocation2 + $0x108] sm:$0xff]
        %v886 = vld [vmem:[#allocation2 + $0x110] sm:$0xff]
        %v887 = vld [vmem:[#allocation2 + $0x118] sm:$0xff]
        %v888 = vld [vmem:[#allocation2 + $0x120] sm:$0xff]
        %v889 = vld [vmem:[#allocation2 + $0x128] sm:$0xff]
        %v890 = vld [vmem:[#allocation2 + $0x130] sm:$0xff]
        %v891 = vld [vmem:[#allocation2 + $0x138] sm:$0xff]
        %v892 = vld [vmem:[#allocation2 + $0x140] sm:$0xff]
        %v893 = vld [vmem:[#allocation2 + $0x148] sm:$0xff]
        %v894 = vld [vmem:[#allocation2 + $0x150] sm:$0xff]
        %v895 = vld [vmem:[#allocation2 + $0x158] sm:$0xff]
        %v896 = vld [vmem:[#allocation2 + $0x160] sm:$0xff]
        %v897 = vld [vmem:[#allocation2 + $0x168] sm:$0xff]
        %v898 = vld [vmem:[#allocation2 + $0x170] sm:$0xff]
        %v899 = vld [vmem:[#allocation2 + $0x178] sm:$0xff]
        %v900 = vld [vmem:[#allocation2 + $0x180] sm:$0xff]
        %v901 = vld [vmem:[#allocation2 + $0x188] sm:$0xff]
        %v902 = vld [vmem:[#allocation2 + $0x190] sm:$0xff]
        %v903 = vld [vmem:[#allocation2 + $0x198] sm:$0xff]
        %v904 = vld [vmem:[#allocation2 + $0x1a0] sm:$0xff]
        %v905 = vld [vmem:[#allocation2 + $0x1a8] sm:$0xff]
        %v906 = vld [vmem:[#allocation2 + $0x1b0] sm:$0xff]
        %v907 = vld [vmem:[#allocation2 + $0x1b8] sm:$0xff]
        %v908 = vld [vmem:[#allocation2 + $0x1c0] sm:$0xff]
        %v909 = vld [vmem:[#allocation2 + $0x1c8] sm:$0xff]
        %v910 = vld [vmem:[#allocation2 + $0x1d0] sm:$0xff]
        %v911 = vld [vmem:[#allocation2 + $0x1d8] sm:$0xff]
        %v912 = vld [vmem:[#allocation2 + $0x1e0] sm:$0xff]
        %v913 = vld [vmem:[#allocation2 + $0x1e8] sm:$0xff]
        %v914 = vld [vmem:[#allocation2 + $0x1f0] sm:$0xff]
        %v915 = vld [vmem:[#allocation2 + $0x1f8] sm:$0xff]
        %v916 = vld [vmem:[%s6] sm:$0xf]
        %v918 = vlaneseq
        %v919 = vshrl.u32 %v918, 7
        %v920 = vsub.s32 0, %v919
        %v921 = vrot.slane %v916, %v920
        %v922 = vlaneseq
        %v923 = vshrl.u32 %v922, 7
        %v924 = vsub.s32 1, %v923
        %v925 = vrot.slane %v916, %v924
        %v926 = vlaneseq
        %v927 = vshrl.u32 %v926, 7
        %v928 = vsub.s32 2, %v927
        %v929 = vrot.slane %v916, %v928
        %v930 = vlaneseq
        %v931 = vshrl.u32 %v930, 7
        %v932 = vsub.s32 3, %v931
        %v933 = vrot.slane %v916, %v932
        %v1002 = vunpack.c.l.b16 %v852
        %v1003 = vunpack.c.h.b16 %v852
        %v1004 = vunpack.c.l.b16 %v853
        %v1005 = vunpack.c.h.b16 %v853
        %v1006 = vunpack.c.l.b16 %v854
        %v1007 = vunpack.c.h.b16 %v854
        %v1008 = vunpack.c.l.b16 %v855
        %v1009 = vunpack.c.h.b16 %v855
        %v1010 = vunpack.c.l.b16 %v856
        %v1011 = vunpack.c.h.b16 %v856
        %v1012 = vunpack.c.l.b16 %v857
        %v1013 = vunpack.c.h.b16 %v857
        %v1014 = vunpack.c.l.b16 %v858
        %v1015 = vunpack.c.h.b16 %v858
        %v1016 = vunpack.c.l.b16 %v859
        %v1017 = vunpack.c.h.b16 %v859
        %v1018 = vunpack.c.l.b16 %v860
        %v1019 = vunpack.c.h.b16 %v860
        %v1020 = vunpack.c.l.b16 %v861
        %v1021 = vunpack.c.h.b16 %v861
        %v1022 = vunpack.c.l.b16 %v862
        %v1023 = vunpack.c.h.b16 %v862
        %v1024 = vunpack.c.l.b16 %v863
        %v1025 = vunpack.c.h.b16 %v863
        %v1026 = vunpack.c.l.b16 %v864
        %v1027 = vunpack.c.h.b16 %v864
        %v1028 = vunpack.c.l.b16 %v865
        %v1029 = vunpack.c.h.b16 %v865
        %v1030 = vunpack.c.l.b16 %v866
        %v1031 = vunpack.c.h.b16 %v866
        %v1032 = vunpack.c.l.b16 %v867
        %v1033 = vunpack.c.h.b16 %v867
        %v1034 = vunpack.c.l.b16 %v868
        %v1035 = vunpack.c.h.b16 %v868
        %v1036 = vunpack.c.l.b16 %v869
        %v1037 = vunpack.c.h.b16 %v869
        %v1038 = vunpack.c.l.b16 %v870
        %v1039 = vunpack.c.h.b16 %v870
        %v1040 = vunpack.c.l.b16 %v871
        %v1041 = vunpack.c.h.b16 %v871
        %v1042 = vunpack.c.l.b16 %v872
        %v1043 = vunpack.c.h.b16 %v872
        %v1044 = vunpack.c.l.b16 %v873
        %v1045 = vunpack.c.h.b16 %v873
        %v1046 = vunpack.c.l.b16 %v874
        %v1047 = vunpack.c.h.b16 %v874
        %v1048 = vunpack.c.l.b16 %v875
        %v1049 = vunpack.c.h.b16 %v875
        %v1050 = vunpack.c.l.b16 %v876
        %v1051 = vunpack.c.h.b16 %v876
        %v1052 = vunpack.c.l.b16 %v877
        %v1053 = vunpack.c.h.b16 %v877
        %v1054 = vunpack.c.l.b16 %v878
        %v1055 = vunpack.c.h.b16 %v878
        %v1056 = vunpack.c.l.b16 %v879
        %v1057 = vunpack.c.h.b16 %v879
        %v1058 = vunpack.c.l.b16 %v880
        %v1059 = vunpack.c.h.b16 %v880
        %v1060 = vunpack.c.l.b16 %v881
        %v1061 = vunpack.c.h.b16 %v881
        %v1062 = vunpack.c.l.b16 %v882
        %v1063 = vunpack.c.h.b16 %v882
        %v1064 = vunpack.c.l.b16 %v883
        %v1065 = vunpack.c.h.b16 %v883
        %v1066 = vunpack.c.l.b16 %v884
        %v1067 = vunpack.c.h.b16 %v884
        %v1068 = vunpack.c.l.b16 %v885
        %v1069 = vunpack.c.h.b16 %v885
        %v1070 = vunpack.c.l.b16 %v886
        %v1071 = vunpack.c.h.b16 %v886
        %v1072 = vunpack.c.l.b16 %v887
        %v1073 = vunpack.c.h.b16 %v887
        %v1074 = vunpack.c.l.b16 %v888
        %v1075 = vunpack.c.h.b16 %v888
        %v1076 = vunpack.c.l.b16 %v889
        %v1077 = vunpack.c.h.b16 %v889
        %v1078 = vunpack.c.l.b16 %v890
        %v1079 = vunpack.c.h.b16 %v890
        %v1080 = vunpack.c.l.b16 %v891
        %v1081 = vunpack.c.h.b16 %v891
        %v1082 = vunpack.c.l.b16 %v892
        %v1083 = vunpack.c.h.b16 %v892
        %v1084 = vunpack.c.l.b16 %v893
        %v1085 = vunpack.c.h.b16 %v893
        %v1086 = vunpack.c.l.b16 %v894
        %v1087 = vunpack.c.h.b16 %v894
        %v1088 = vunpack.c.l.b16 %v895
        %v1089 = vunpack.c.h.b16 %v895
        %v1090 = vunpack.c.l.b16 %v896
        %v1091 = vunpack.c.h.b16 %v896
        %v1092 = vunpack.c.l.b16 %v897
        %v1093 = vunpack.c.h.b16 %v897
        %v1094 = vunpack.c.l.b16 %v898
        %v1095 = vunpack.c.h.b16 %v898
        %v1096 = vunpack.c.l.b16 %v899
        %v1097 = vunpack.c.h.b16 %v899
        %v1098 = vunpack.c.l.b16 %v900
        %v1099 = vunpack.c.h.b16 %v900
        %v1100 = vunpack.c.l.b16 %v901
        %v1101 = vunpack.c.h.b16 %v901
        %v1102 = vunpack.c.l.b16 %v902
        %v1103 = vunpack.c.h.b16 %v902
        %v1104 = vunpack.c.l.b16 %v903
        %v1105 = vunpack.c.h.b16 %v903
        %v1106 = vunpack.c.l.b16 %v904
        %v1107 = vunpack.c.h.b16 %v904
        %v1108 = vunpack.c.l.b16 %v905
        %v1109 = vunpack.c.h.b16 %v905
        %v1110 = vunpack.c.l.b16 %v906
        %v1111 = vunpack.c.h.b16 %v906
        %v1112 = vunpack.c.l.b16 %v907
        %v1113 = vunpack.c.h.b16 %v907
        %v1114 = vunpack.c.l.b16 %v908
        %v1115 = vunpack.c.h.b16 %v908
        %v1116 = vunpack.c.l.b16 %v909
        %v1117 = vunpack.c.h.b16 %v909
        %v1118 = vunpack.c.l.b16 %v910
        %v1119 = vunpack.c.h.b16 %v910
        %v1120 = vunpack.c.l.b16 %v911
        %v1121 = vunpack.c.h.b16 %v911
        %v1122 = vunpack.c.l.b16 %v912
        %v1123 = vunpack.c.h.b16 %v912
        %v1124 = vunpack.c.l.b16 %v913
        %v1125 = vunpack.c.h.b16 %v913
        %v1126 = vunpack.c.l.b16 %v914
        %v1127 = vunpack.c.h.b16 %v914
        %v1128 = vunpack.c.l.b16 %v915
        %v1129 = vunpack.c.h.b16 %v915
        %v1130 = vpack.c.b16 %v1006, %v1002
        %v1131 = vpack.c.b16 %v1007, %v1003
        %v1132 = vpack.c.b16 %v1008, %v1004
        %v1133 = vpack.c.b16 %v1009, %v1005
        %v1134 = vpack.c.b16 %v1014, %v1010
        %v1135 = vpack.c.b16 %v1015, %v1011
        %v1136 = vpack.c.b16 %v1016, %v1012
        %v1137 = vpack.c.b16 %v1017, %v1013
        %v1138 = vpack.c.b16 %v1022, %v1018
        %v1139 = vpack.c.b16 %v1023, %v1019
        %v1140 = vpack.c.b16 %v1024, %v1020
        %v1141 = vpack.c.b16 %v1025, %v1021
        %v1142 = vpack.c.b16 %v1030, %v1026
        %v1143 = vpack.c.b16 %v1031, %v1027
        %v1144 = vpack.c.b16 %v1032, %v1028
        %v1145 = vpack.c.b16 %v1033, %v1029
        %v1146 = vpack.c.b16 %v1038, %v1034
        %v1147 = vpack.c.b16 %v1039, %v1035
        %v1148 = vpack.c.b16 %v1040, %v1036
        %v1149 = vpack.c.b16 %v1041, %v1037
        %v1150 = vpack.c.b16 %v1046, %v1042
        %v1151 = vpack.c.b16 %v1047, %v1043
        %v1152 = vpack.c.b16 %v1048, %v1044
        %v1153 = vpack.c.b16 %v1049, %v1045
        %v1154 = vpack.c.b16 %v1054, %v1050
        %v1155 = vpack.c.b16 %v1055, %v1051
        %v1156 = vpack.c.b16 %v1056, %v1052
        %v1157 = vpack.c.b16 %v1057, %v1053
        %v1158 = vpack.c.b16 %v1062, %v1058
        %v1159 = vpack.c.b16 %v1063, %v1059
        %v1160 = vpack.c.b16 %v1064, %v1060
        %v1161 = vpack.c.b16 %v1065, %v1061
        %v1162 = vpack.c.b16 %v1070, %v1066
        %v1163 = vpack.c.b16 %v1071, %v1067
        %v1164 = vpack.c.b16 %v1072, %v1068
        %v1165 = vpack.c.b16 %v1073, %v1069
        %v1166 = vpack.c.b16 %v1078, %v1074
        %v1167 = vpack.c.b16 %v1079, %v1075
        %v1168 = vpack.c.b16 %v1080, %v1076
        %v1169 = vpack.c.b16 %v1081, %v1077
        %v1170 = vpack.c.b16 %v1086, %v1082
        %v1171 = vpack.c.b16 %v1087, %v1083
        %v1172 = vpack.c.b16 %v1088, %v1084
        %v1173 = vpack.c.b16 %v1089, %v1085
        %v1174 = vpack.c.b16 %v1094, %v1090
        %v1175 = vpack.c.b16 %v1095, %v1091
        %v1176 = vpack.c.b16 %v1096, %v1092
        %v1177 = vpack.c.b16 %v1097, %v1093
        %v1178 = vpack.c.b16 %v1102, %v1098
        %v1179 = vpack.c.b16 %v1103, %v1099
        %v1180 = vpack.c.b16 %v1104, %v1100
        %v1181 = vpack.c.b16 %v1105, %v1101
        %v1182 = vpack.c.b16 %v1110, %v1106
        %v1183 = vpack.c.b16 %v1111, %v1107
        %v1184 = vpack.c.b16 %v1112, %v1108
        %v1185 = vpack.c.b16 %v1113, %v1109
        %v1186 = vpack.c.b16 %v1118, %v1114
        %v1187 = vpack.c.b16 %v1119, %v1115
        %v1188 = vpack.c.b16 %v1120, %v1116
        %v1189 = vpack.c.b16 %v1121, %v1117
        %v1190 = vpack.c.b16 %v1126, %v1122
        %v1191 = vpack.c.b16 %v1127, %v1123
        %v1192 = vpack.c.b16 %v1128, %v1124
        %v1193 = vpack.c.b16 %v1129, %v1125
        %1258 = vmatprep.subr.bf16.mxu0 %v1131
        %1259 = vmatpush1.bf16.msra.mxu0 %v1130
        %1260 = vmatprep.subr.bf16.mxu0 %v1135
        %1261 = vmatpush1.bf16.msra.mxu0 %v1134
        %1262 = vmatprep.subr.bf16.mxu0 %v1139
        %1263 = vmatpush1.bf16.msra.mxu0 %v1138
        %1264 = vmatprep.subr.bf16.mxu0 %v1143
        %1265 = vmatpush1.bf16.msra.mxu0 %v1142
        %1266 = vmatprep.subr.bf16.mxu0 %v1147
        %1267 = vmatpush1.bf16.msra.mxu0 %v1146
        %1268 = vmatprep.subr.bf16.mxu0 %v1151
        %1269 = vmatpush1.bf16.msra.mxu0 %v1150
        %1270 = vmatprep.subr.bf16.mxu0 %v1155
        %1271 = vmatpush1.bf16.msra.mxu0 %v1154
        %1272 = vmatprep.subr.bf16.mxu0 %v1159
        %1273 = vmatpush1.bf16.msra.mxu0 %v1158
        %1274 = vmatprep.subr.bf16.mxu0 %v1163
        %1275 = vmatpush1.bf16.msra.mxu0 %v1162
        %1276 = vmatprep.subr.bf16.mxu0 %v1167
        %1277 = vmatpush1.bf16.msra.mxu0 %v1166
        %1278 = vmatprep.subr.bf16.mxu0 %v1171
        %1279 = vmatpush1.bf16.msra.mxu0 %v1170
        %1280 = vmatprep.subr.bf16.mxu0 %v1175
        %1281 = vmatpush1.bf16.msra.mxu0 %v1174
        %1282 = vmatprep.subr.bf16.mxu0 %v1179
        %1283 = vmatpush1.bf16.msra.mxu0 %v1178
        %1284 = vmatprep.subr.bf16.mxu0 %v1183
        %1285 = vmatpush1.bf16.msra.mxu0 %v1182
        %1286 = vmatprep.subr.bf16.mxu0 %v1187
        %1287 = vmatpush1.bf16.msra.mxu0 %v1186
        %1288 = vmatprep.subr.bf16.mxu0 %v1191
        %1289 = vmatpush1.bf16.msra.mxu0 %v1190
        %1290 = vmatprep.mubr.bf16.mxu0 %v849
        %1291 = vmatmul.mubr.bf16.gmra.mrb[0].mxu0 %v848
        %v1292 = vpop.f32.mrb[0].mxu0
        %v1293 = vadd.f32 %v921, %v1292
        %v1294 = vpop.f32.mrb[0].mxu0
        %v1295 = vadd.f32 %v925, %v1294
        %v1296 = vpop.f32.mrb[0].mxu0
        %v1297 = vadd.f32 %v921, %v1296
        %v1298 = vpop.f32.mrb[0].mxu0
        %v1299 = vadd.f32 %v925, %v1298
        %1300 = vmatprep.mubr.bf16.mxu0 %v851
        %1301 = vmatmul.mubr.bf16.gmra.mrb[0].mxu0 %v850
        %v1302 = vpop.f32.mrb[0].mxu0
        %v1303 = vadd.f32 %v921, %v1302
        %v1304 = vpop.f32.mrb[0].mxu0
        %v1305 = vadd.f32 %v925, %v1304
        %v1306 = vpop.f32.mrb[0].mxu0
        %v1307 = vadd.f32 %v921, %v1306
        %v1308 = vpop.f32.mrb[0].mxu0
        %v1309 = vadd.f32 %v925, %v1308
        %1310 = vdwg.mxu0
        %1311 = vmatprep.subr.bf16.mxu0 %v1133
        %1312 = vmatpush1.bf16.msra.mxu0 %v1132
        %1313 = vmatprep.subr.bf16.mxu0 %v1137
        %1314 = vmatpush1.bf16.msra.mxu0 %v1136
        %1315 = vmatprep.subr.bf16.mxu0 %v1141
        %1316 = vmatpush1.bf16.msra.mxu0 %v1140
        %1317 = vmatprep.subr.bf16.mxu0 %v1145
        %1318 = vmatpush1.bf16.msra.mxu0 %v1144
        %1319 = vmatprep.subr.bf16.mxu0 %v1149
        %1320 = vmatpush1.bf16.msra.mxu0 %v1148
        %1321 = vmatprep.subr.bf16.mxu0 %v1153
        %1322 = vmatpush1.bf16.msra.mxu0 %v1152
        %1323 = vmatprep.subr.bf16.mxu0 %v1157
        %1324 = vmatpush1.bf16.msra.mxu0 %v1156
        %1325 = vmatprep.subr.bf16.mxu0 %v1161
        %1326 = vmatpush1.bf16.msra.mxu0 %v1160
        %1327 = vmatprep.subr.bf16.mxu0 %v1165
        %1328 = vmatpush1.bf16.msra.mxu0 %v1164
        %1329 = vmatprep.subr.bf16.mxu0 %v1169
        %1330 = vmatpush1.bf16.msra.mxu0 %v1168
        %1331 = vmatprep.subr.bf16.mxu0 %v1173
        %1332 = vmatpush1.bf16.msra.mxu0 %v1172
        %1333 = vmatprep.subr.bf16.mxu0 %v1177
        %1334 = vmatpush1.bf16.msra.mxu0 %v1176
        %1335 = vmatprep.subr.bf16.mxu0 %v1181
        %1336 = vmatpush1.bf16.msra.mxu0 %v1180
        %1337 = vmatprep.subr.bf16.mxu0 %v1185
        %1338 = vmatpush1.bf16.msra.mxu0 %v1184
        %1339 = vmatprep.subr.bf16.mxu0 %v1189
        %1340 = vmatpush1.bf16.msra.mxu0 %v1188
        %1341 = vmatprep.subr.bf16.mxu0 %v1193
        %1342 = vmatpush1.bf16.msra.mxu0 %v1192
        %1343 = vmatprep.mubr.bf16.mxu0 %v849
        %1344 = vmatmul.mubr.bf16.gmra.mrb[0].mxu0 %v848
        %v1345 = vpop.f32.mrb[0].mxu0
        %v1346 = vadd.f32 %v929, %v1345
        %v1347 = vpop.f32.mrb[0].mxu0
        %v1348 = vadd.f32 %v933, %v1347
        %v1349 = vpop.f32.mrb[0].mxu0
        %v1350 = vadd.f32 %v929, %v1349
        %v1351 = vpop.f32.mrb[0].mxu0
        %v1352 = vadd.f32 %v933, %v1351
        %1353 = vmatprep.mubr.bf16.mxu0 %v851
        %1354 = vmatmul.mubr.bf16.gmra.mrb[0].mxu0 %v850
        %v1355 = vpop.f32.mrb[0].mxu0
        %v1356 = vadd.f32 %v929, %v1355
        %v1357 = vpop.f32.mrb[0].mxu0
        %v1358 = vadd.f32 %v933, %v1357
        %v1359 = vpop.f32.mrb[0].mxu0
        %v1360 = vadd.f32 %v929, %v1359
        %v1361 = vpop.f32.mrb[0].mxu0
        %v1362 = vadd.f32 %v933, %v1361
        %1363 = vdwg.mxu0
        %v1364 = vld [vmem:[%s7] sm:$0xf]
        %v1365 = vld [vmem:[%s8] sm:$0xf]
        %v1366 = vadd.f32 %v1293, %v1295
        %v1367 = vadd.f32 %v1366, %v1346
        %v1368 = vadd.f32 %v1367, %v1348
        %1369 = vadd.xlane.f32.xlu0 %v1368
        %v1370 = vpop.xlane.xlu0 %1369
        %v1371 = vadd.f32 %v1297, %v1299
        %v1372 = vadd.f32 %v1371, %v1350
        %v1373 = vadd.f32 %v1372, %v1352
        %1374 = vadd.xlane.f32.xlu0 %v1373
        %v1375 = vpop.xlane.xlu0 %1374
        %v1376 = vadd.f32 %v1303, %v1305
        %v1377 = vadd.f32 %v1376, %v1356
        %v1378 = vadd.f32 %v1377, %v1358
        %1379 = vadd.xlane.f32.xlu0 %v1378
        %v1380 = vpop.xlane.xlu0 %1379
        %v1381 = vadd.f32 %v1307, %v1309
        %v1382 = vadd.f32 %v1381, %v1360
        %v1383 = vadd.f32 %v1382, %v1362
        %1384 = vadd.xlane.f32.xlu0 %v1383
        %v1385 = vpop.xlane.xlu0 %1384
        %v1386 = vmul.f32 %v1293, %v1293
        %v1387 = vmul.f32 %v1295, %v1295
        %v1388 = vmul.f32 %v1346, %v1346
        %v1389 = vmul.f32 %v1348, %v1348
        %v1390 = vmul.f32 %v1297, %v1297
        %v1391 = vmul.f32 %v1299, %v1299
        %v1392 = vmul.f32 %v1350, %v1350
        %v1393 = vmul.f32 %v1352, %v1352
        %v1394 = vmul.f32 %v1303, %v1303
        %v1395 = vmul.f32 %v1305, %v1305
        %v1396 = vmul.f32 %v1356, %v1356
        %v1397 = vmul.f32 %v1358, %v1358
        %v1398 = vmul.f32 %v1307, %v1307
        %v1399 = vmul.f32 %v1309, %v1309
        %v1400 = vmul.f32 %v1360, %v1360
        %v1401 = vmul.f32 %v1362, %v1362
        %v1402 = vadd.f32 %v1386, %v1387
        %v1403 = vadd.f32 %v1402, %v1388
        %v1404 = vadd.f32 %v1403, %v1389
        %1405 = vadd.xlane.f32.xlu0 %v1404
        %v1406 = vpop.xlane.xlu0 %1405
        %v1407 = vadd.f32 %v1390, %v1391
        %v1408 = vadd.f32 %v1407, %v1392
        %v1409 = vadd.f32 %v1408, %v1393
        %1410 = vadd.xlane.f32.xlu0 %v1409
        %v1411 = vpop.xlane.xlu0 %1410
        %v1412 = vadd.f32 %v1394, %v1395
        %v1413 = vadd.f32 %v1412, %v1396
        %v1414 = vadd.f32 %v1413, %v1397
        %1415 = vadd.xlane.f32.xlu0 %v1414
        %v1416 = vpop.xlane.xlu0 %1415
        %v1417 = vadd.f32 %v1398, %v1399
        %v1418 = vadd.f32 %v1417, %v1400
        %v1419 = vadd.f32 %v1418, %v1401
        %1420 = vadd.xlane.f32.xlu0 %v1419
        %v1421 = vpop.xlane.xlu0 %1420
        %v1422 = vmul.f32 %v1370, 0.001953125
        %v1423 = vmul.f32 %v1375, 0.001953125
        %v1424 = vmul.f32 %v1380, 0.001953125
        %v1425 = vmul.f32 %v1385, 0.001953125
        %v1426 = vmul.f32 %v1406, 0.001953125
        %v1427 = vmul.f32 %v1411, 0.001953125
        %v1428 = vmul.f32 %v1416, 0.001953125
        %v1429 = vmul.f32 %v1421, 0.001953125
        %v1430 = vmul.f32 %v1422, %v1422
        %v1431 = vmul.f32 %v1423, %v1423
        %v1432 = vmul.f32 %v1424, %v1424
        %v1433 = vmul.f32 %v1425, %v1425
        %v1434 = vsub.f32 %v1426, %v1430
        %v1435 = vsub.f32 %v1427, %v1431
        %v1436 = vsub.f32 %v1428, %v1432
        %v1437 = vsub.f32 %v1429, %v1433
        %v1438 = vadd.f32 %v1434, 1e-05
        %v1439 = vadd.f32 %v1435, 1e-05
        %v1440 = vadd.f32 %v1436, 1e-05
        %v1441 = vadd.f32 %v1437, 1e-05
        %v1442 = vrsqrt.pop %v1438
        %v1443 = vrsqrt.pop %v1439
        %v1444 = vrsqrt.pop %v1440
        %v1445 = vrsqrt.pop %v1441
        %v1446 = vsub.f32 %v1293, %v1422
        %v1447 = vsub.f32 %v1295, %v1422
        %v1448 = vsub.f32 %v1346, %v1422
        %v1449 = vsub.f32 %v1348, %v1422
        %v1450 = vsub.f32 %v1297, %v1423
        %v1451 = vsub.f32 %v1299, %v1423
        %v1452 = vsub.f32 %v1350, %v1423
        %v1453 = vsub.f32 %v1352, %v1423
        %v1454 = vsub.f32 %v1303, %v1424
        %v1455 = vsub.f32 %v1305, %v1424
        %v1456 = vsub.f32 %v1356, %v1424
        %v1457 = vsub.f32 %v1358, %v1424
        %v1458 = vsub.f32 %v1307, %v1425
        %v1459 = vsub.f32 %v1309, %v1425
        %v1460 = vsub.f32 %v1360, %v1425
        %v1461 = vsub.f32 %v1362, %v1425
        %v1463 = vlaneseq
        %v1464 = vshrl.u32 %v1463, 7
        %v1465 = vsub.s32 0, %v1464
        %v1466 = vrot.slane %v1364, %v1465
        %v1467 = vlaneseq
        %v1468 = vshrl.u32 %v1467, 7
        %v1469 = vsub.s32 1, %v1468
        %v1470 = vrot.slane %v1364, %v1469
        %v1471 = vlaneseq
        %v1472 = vshrl.u32 %v1471, 7
        %v1473 = vsub.s32 2, %v1472
        %v1474 = vrot.slane %v1364, %v1473
        %v1475 = vlaneseq
        %v1476 = vshrl.u32 %v1475, 7
        %v1477 = vsub.s32 3, %v1476
        %v1478 = vrot.slane %v1364, %v1477
        %v1483 = vmul.f32 %v1442, %v1466
        %v1484 = vmul.f32 %v1442, %v1470
        %v1485 = vmul.f32 %v1442, %v1474
        %v1486 = vmul.f32 %v1442, %v1478
        %v1487 = vmul.f32 %v1443, %v1466
        %v1488 = vmul.f32 %v1443, %v1470
        %v1489 = vmul.f32 %v1443, %v1474
        %v1490 = vmul.f32 %v1443, %v1478
        %v1491 = vmul.f32 %v1444, %v1466
        %v1492 = vmul.f32 %v1444, %v1470
        %v1493 = vmul.f32 %v1444, %v1474
        %v1494 = vmul.f32 %v1444, %v1478
        %v1495 = vmul.f32 %v1445, %v1466
        %v1496 = vmul.f32 %v1445, %v1470
        %v1497 = vmul.f32 %v1445, %v1474
        %v1498 = vmul.f32 %v1445, %v1478
        %v1499 = vmul.f32 %v1446, %v1483
        %v1500 = vmul.f32 %v1447, %v1484
        %v1501 = vmul.f32 %v1448, %v1485
        %v1502 = vmul.f32 %v1449, %v1486
        %v1503 = vmul.f32 %v1450, %v1487
        %v1504 = vmul.f32 %v1451, %v1488
        %v1505 = vmul.f32 %v1452, %v1489
        %v1506 = vmul.f32 %v1453, %v1490
        %v1507 = vmul.f32 %v1454, %v1491
        %v1508 = vmul.f32 %v1455, %v1492
        %v1509 = vmul.f32 %v1456, %v1493
        %v1510 = vmul.f32 %v1457, %v1494
        %v1511 = vmul.f32 %v1458, %v1495
        %v1512 = vmul.f32 %v1459, %v1496
        %v1513 = vmul.f32 %v1460, %v1497
        %v1514 = vmul.f32 %v1461, %v1498
        %v1516 = vlaneseq
        %v1517 = vshrl.u32 %v1516, 7
        %v1518 = vsub.s32 0, %v1517
        %v1519 = vrot.slane %v1365, %v1518
        %v1520 = vlaneseq
        %v1521 = vshrl.u32 %v1520, 7
        %v1522 = vsub.s32 1, %v1521
        %v1523 = vrot.slane %v1365, %v1522
        %v1524 = vlaneseq
        %v1525 = vshrl.u32 %v1524, 7
        %v1526 = vsub.s32 2, %v1525
        %v1527 = vrot.slane %v1365, %v1526
        %v1528 = vlaneseq
        %v1529 = vshrl.u32 %v1528, 7
        %v1530 = vsub.s32 3, %v1529
        %v1531 = vrot.slane %v1365, %v1530
        %v1536 = vadd.f32 %v1499, %v1519
        %v1537 = vadd.f32 %v1500, %v1523
        %v1538 = vadd.f32 %v1501, %v1527
        %v1539 = vadd.f32 %v1502, %v1531
        %v1540 = vadd.f32 %v1503, %v1519
        %v1541 = vadd.f32 %v1504, %v1523
        %v1542 = vadd.f32 %v1505, %v1527
        %v1543 = vadd.f32 %v1506, %v1531
        %v1544 = vadd.f32 %v1507, %v1519
        %v1545 = vadd.f32 %v1508, %v1523
        %v1546 = vadd.f32 %v1509, %v1527
        %v1547 = vadd.f32 %v1510, %v1531
        %v1548 = vadd.f32 %v1511, %v1519
        %v1549 = vadd.f32 %v1512, %v1523
        %v1550 = vadd.f32 %v1513, %v1527
        %v1551 = vadd.f32 %v1514, %v1531
        %v1552 = vmul.f32 %v1536, 0.2
        %v1553 = vmul.f32 %v1537, 0.2
        %v1554 = vmul.f32 %v1538, 0.2
        %v1555 = vmul.f32 %v1539, 0.2
        %v1556 = vmul.f32 %v1540, 0.2
        %v1557 = vmul.f32 %v1541, 0.2
        %v1558 = vmul.f32 %v1542, 0.2
        %v1559 = vmul.f32 %v1543, 0.2
        %v1560 = vmul.f32 %v1544, 0.2
        %v1561 = vmul.f32 %v1545, 0.2
        %v1562 = vmul.f32 %v1546, 0.2
        %v1563 = vmul.f32 %v1547, 0.2
        %v1564 = vmul.f32 %v1548, 0.2
        %v1565 = vmul.f32 %v1549, 0.2
        %v1566 = vmul.f32 %v1550, 0.2
        %v1567 = vmul.f32 %v1551, 0.2
        %v1568 = vmax.f32 %v1536, %v1552
        %v1569 = vmax.f32 %v1537, %v1553
        %v1570 = vmax.f32 %v1538, %v1554
        %v1571 = vmax.f32 %v1539, %v1555
        %v1572 = vmax.f32 %v1540, %v1556
        %v1573 = vmax.f32 %v1541, %v1557
        %v1574 = vmax.f32 %v1542, %v1558
        %v1575 = vmax.f32 %v1543, %v1559
        %v1576 = vmax.f32 %v1544, %v1560
        %v1577 = vmax.f32 %v1545, %v1561
        %v1578 = vmax.f32 %v1546, %v1562
        %v1579 = vmax.f32 %v1547, %v1563
        %v1580 = vmax.f32 %v1548, %v1564
        %v1581 = vmax.f32 %v1549, %v1565
        %v1582 = vmax.f32 %v1550, %v1566
        %v1583 = vmax.f32 %v1551, %v1567
        %v1584 = vpack.c.bf16 %v1572, %v1568
        %v1585 = vpack.c.bf16 %v1573, %v1569
        %v1586 = vpack.c.bf16 %v1574, %v1570
        %v1587 = vpack.c.bf16 %v1575, %v1571
        %v1588 = vpack.c.bf16 %v1580, %v1576
        %v1589 = vpack.c.bf16 %v1581, %v1577
        %v1590 = vpack.c.bf16 %v1582, %v1578
        %v1591 = vpack.c.bf16 %v1583, %v1579
        %v1592 = vld [vmem:[#allocation4] sm:$0xff]
        %v1593 = vld [vmem:[#allocation4 + $0x8] sm:$0xff]
        %v1594 = vld [vmem:[#allocation4 + $0x10] sm:$0xff]
        %v1595 = vld [vmem:[#allocation4 + $0x18] sm:$0xff]
        %v1596 = vld [vmem:[#allocation4 + $0x20] sm:$0xff]
        %v1597 = vld [vmem:[#allocation4 + $0x28] sm:$0xff]
        %v1598 = vld [vmem:[#allocation4 + $0x30] sm:$0xff]
        %v1599 = vld [vmem:[#allocation4 + $0x38] sm:$0xff]
        %v1600 = vld [vmem:[#allocation4 + $0x40] sm:$0xff]
        %v1601 = vld [vmem:[#allocation4 + $0x48] sm:$0xff]
        %v1602 = vld [vmem:[#allocation4 + $0x50] sm:$0xff]
        %v1603 = vld [vmem:[#allocation4 + $0x58] sm:$0xff]
        %v1604 = vld [vmem:[#allocation4 + $0x60] sm:$0xff]
        %v1605 = vld [vmem:[#allocation4 + $0x68] sm:$0xff]
        %v1606 = vld [vmem:[#allocation4 + $0x70] sm:$0xff]
        %v1607 = vld [vmem:[#allocation4 + $0x78] sm:$0xff]
        %v1608 = vld [vmem:[#allocation4 + $0x80] sm:$0xff]
        %v1609 = vld [vmem:[#allocation4 + $0x88] sm:$0xff]
        %v1610 = vld [vmem:[#allocation4 + $0x90] sm:$0xff]
        %v1611 = vld [vmem:[#allocation4 + $0x98] sm:$0xff]
        %v1612 = vld [vmem:[#allocation4 + $0xa0] sm:$0xff]
        %v1613 = vld [vmem:[#allocation4 + $0xa8] sm:$0xff]
        %v1614 = vld [vmem:[#allocation4 + $0xb0] sm:$0xff]
        %v1615 = vld [vmem:[#allocation4 + $0xb8] sm:$0xff]
        %v1616 = vld [vmem:[#allocation4 + $0xc0] sm:$0xff]
        %v1617 = vld [vmem:[#allocation4 + $0xc8] sm:$0xff]
        %v1618 = vld [vmem:[#allocation4 + $0xd0] sm:$0xff]
        %v1619 = vld [vmem:[#allocation4 + $0xd8] sm:$0xff]
        %v1620 = vld [vmem:[#allocation4 + $0xe0] sm:$0xff]
        %v1621 = vld [vmem:[#allocation4 + $0xe8] sm:$0xff]
        %v1622 = vld [vmem:[#allocation4 + $0xf0] sm:$0xff]
        %v1623 = vld [vmem:[#allocation4 + $0xf8] sm:$0xff]
        %v1624 = vld [vmem:[#allocation4 + $0x100] sm:$0xff]
        %v1625 = vld [vmem:[#allocation4 + $0x108] sm:$0xff]
        %v1626 = vld [vmem:[#allocation4 + $0x110] sm:$0xff]
        %v1627 = vld [vmem:[#allocation4 + $0x118] sm:$0xff]
        %v1628 = vld [vmem:[#allocation4 + $0x120] sm:$0xff]
        %v1629 = vld [vmem:[#allocation4 + $0x128] sm:$0xff]
        %v1630 = vld [vmem:[#allocation4 + $0x130] sm:$0xff]
        %v1631 = vld [vmem:[#allocation4 + $0x138] sm:$0xff]
        %v1632 = vld [vmem:[#allocation4 + $0x140] sm:$0xff]
        %v1633 = vld [vmem:[#allocation4 + $0x148] sm:$0xff]
        %v1634 = vld [vmem:[#allocation4 + $0x150] sm:$0xff]
        %v1635 = vld [vmem:[#allocation4 + $0x158] sm:$0xff]
        %v1636 = vld [vmem:[#allocation4 + $0x160] sm:$0xff]
        %v1637 = vld [vmem:[#allocation4 + $0x168] sm:$0xff]
        %v1638 = vld [vmem:[#allocation4 + $0x170] sm:$0xff]
        %v1639 = vld [vmem:[#allocation4 + $0x178] sm:$0xff]
        %v1640 = vld [vmem:[#allocation4 + $0x180] sm:$0xff]
        %v1641 = vld [vmem:[#allocation4 + $0x188] sm:$0xff]
        %v1642 = vld [vmem:[#allocation4 + $0x190] sm:$0xff]
        %v1643 = vld [vmem:[#allocation4 + $0x198] sm:$0xff]
        %v1644 = vld [vmem:[#allocation4 + $0x1a0] sm:$0xff]
        %v1645 = vld [vmem:[#allocation4 + $0x1a8] sm:$0xff]
        %v1646 = vld [vmem:[#allocation4 + $0x1b0] sm:$0xff]
        %v1647 = vld [vmem:[#allocation4 + $0x1b8] sm:$0xff]
        %v1648 = vld [vmem:[#allocation4 + $0x1c0] sm:$0xff]
        %v1649 = vld [vmem:[#allocation4 + $0x1c8] sm:$0xff]
        %v1650 = vld [vmem:[#allocation4 + $0x1d0] sm:$0xff]
        %v1651 = vld [vmem:[#allocation4 + $0x1d8] sm:$0xff]
        %v1652 = vld [vmem:[#allocation4 + $0x1e0] sm:$0xff]
        %v1653 = vld [vmem:[#allocation4 + $0x1e8] sm:$0xff]
        %v1654 = vld [vmem:[#allocation4 + $0x1f0] sm:$0xff]
        %v1655 = vld [vmem:[#allocation4 + $0x1f8] sm:$0xff]
        %v1656 = vld [vmem:[%s10] sm:$0x3]
        %v1658 = vlaneseq
        %v1659 = vshrl.u32 %v1658, 7
        %v1660 = vsub.s32 0, %v1659
        %v1661 = vrot.slane %v1656, %v1660
        %v1662 = vlaneseq
        %v1663 = vshrl.u32 %v1662, 7
        %v1664 = vsub.s32 1, %v1663
        %v1665 = vrot.slane %v1656, %v1664
        %v1732 = vunpack.c.l.b16 %v1592
        %v1733 = vunpack.c.h.b16 %v1592
        %v1734 = vunpack.c.l.b16 %v1593
        %v1735 = vunpack.c.h.b16 %v1593
        %v1736 = vunpack.c.l.b16 %v1594
        %v1737 = vunpack.c.h.b16 %v1594
        %v1738 = vunpack.c.l.b16 %v1595
        %v1739 = vunpack.c.h.b16 %v1595
        %v1740 = vunpack.c.l.b16 %v1596
        %v1741 = vunpack.c.h.b16 %v1596
        %v1742 = vunpack.c.l.b16 %v1597
        %v1743 = vunpack.c.h.b16 %v1597
        %v1744 = vunpack.c.l.b16 %v1598
        %v1745 = vunpack.c.h.b16 %v1598
        %v1746 = vunpack.c.l.b16 %v1599
        %v1747 = vunpack.c.h.b16 %v1599
        %v1748 = vunpack.c.l.b16 %v1600
        %v1749 = vunpack.c.h.b16 %v1600
        %v1750 = vunpack.c.l.b16 %v1601
        %v1751 = vunpack.c.h.b16 %v1601
        %v1752 = vunpack.c.l.b16 %v1602
        %v1753 = vunpack.c.h.b16 %v1602
        %v1754 = vunpack.c.l.b16 %v1603
        %v1755 = vunpack.c.h.b16 %v1603
        %v1756 = vunpack.c.l.b16 %v1604
        %v1757 = vunpack.c.h.b16 %v1604
        %v1758 = vunpack.c.l.b16 %v1605
        %v1759 = vunpack.c.h.b16 %v1605
        %v1760 = vunpack.c.l.b16 %v1606
        %v1761 = vunpack.c.h.b16 %v1606
        %v1762 = vunpack.c.l.b16 %v1607
        %v1763 = vunpack.c.h.b16 %v1607
        %v1764 = vunpack.c.l.b16 %v1608
        %v1765 = vunpack.c.h.b16 %v1608
        %v1766 = vunpack.c.l.b16 %v1609
        %v1767 = vunpack.c.h.b16 %v1609
        %v1768 = vunpack.c.l.b16 %v1610
        %v1769 = vunpack.c.h.b16 %v1610
        %v1770 = vunpack.c.l.b16 %v1611
        %v1771 = vunpack.c.h.b16 %v1611
        %v1772 = vunpack.c.l.b16 %v1612
        %v1773 = vunpack.c.h.b16 %v1612
        %v1774 = vunpack.c.l.b16 %v1613
        %v1775 = vunpack.c.h.b16 %v1613
        %v1776 = vunpack.c.l.b16 %v1614
        %v1777 = vunpack.c.h.b16 %v1614
        %v1778 = vunpack.c.l.b16 %v1615
        %v1779 = vunpack.c.h.b16 %v1615
        %v1780 = vunpack.c.l.b16 %v1616
        %v1781 = vunpack.c.h.b16 %v1616
        %v1782 = vunpack.c.l.b16 %v1617
        %v1783 = vunpack.c.h.b16 %v1617
        %v1784 = vunpack.c.l.b16 %v1618
        %v1785 = vunpack.c.h.b16 %v1618
        %v1786 = vunpack.c.l.b16 %v1619
        %v1787 = vunpack.c.h.b16 %v1619
        %v1788 = vunpack.c.l.b16 %v1620
        %v1789 = vunpack.c.h.b16 %v1620
        %v1790 = vunpack.c.l.b16 %v1621
        %v1791 = vunpack.c.h.b16 %v1621
        %v1792 = vunpack.c.l.b16 %v1622
        %v1793 = vunpack.c.h.b16 %v1622
        %v1794 = vunpack.c.l.b16 %v1623
        %v1795 = vunpack.c.h.b16 %v1623
        %v1796 = vunpack.c.l.b16 %v1624
        %v1797 = vunpack.c.h.b16 %v1624
        %v1798 = vunpack.c.l.b16 %v1625
        %v1799 = vunpack.c.h.b16 %v1625
        %v1800 = vunpack.c.l.b16 %v1626
        %v1801 = vunpack.c.h.b16 %v1626
        %v1802 = vunpack.c.l.b16 %v1627
        %v1803 = vunpack.c.h.b16 %v1627
        %v1804 = vunpack.c.l.b16 %v1628
        %v1805 = vunpack.c.h.b16 %v1628
        %v1806 = vunpack.c.l.b16 %v1629
        %v1807 = vunpack.c.h.b16 %v1629
        %v1808 = vunpack.c.l.b16 %v1630
        %v1809 = vunpack.c.h.b16 %v1630
        %v1810 = vunpack.c.l.b16 %v1631
        %v1811 = vunpack.c.h.b16 %v1631
        %v1812 = vunpack.c.l.b16 %v1632
        %v1813 = vunpack.c.h.b16 %v1632
        %v1814 = vunpack.c.l.b16 %v1633
        %v1815 = vunpack.c.h.b16 %v1633
        %v1816 = vunpack.c.l.b16 %v1634
        %v1817 = vunpack.c.h.b16 %v1634
        %v1818 = vunpack.c.l.b16 %v1635
        %v1819 = vunpack.c.h.b16 %v1635
        %v1820 = vunpack.c.l.b16 %v1636
        %v1821 = vunpack.c.h.b16 %v1636
        %v1822 = vunpack.c.l.b16 %v1637
        %v1823 = vunpack.c.h.b16 %v1637
        %v1824 = vunpack.c.l.b16 %v1638
        %v1825 = vunpack.c.h.b16 %v1638
        %v1826 = vunpack.c.l.b16 %v1639
        %v1827 = vunpack.c.h.b16 %v1639
        %v1828 = vunpack.c.l.b16 %v1640
        %v1829 = vunpack.c.h.b16 %v1640
        %v1830 = vunpack.c.l.b16 %v1641
        %v1831 = vunpack.c.h.b16 %v1641
        %v1832 = vunpack.c.l.b16 %v1642
        %v1833 = vunpack.c.h.b16 %v1642
        %v1834 = vunpack.c.l.b16 %v1643
        %v1835 = vunpack.c.h.b16 %v1643
        %v1836 = vunpack.c.l.b16 %v1644
        %v1837 = vunpack.c.h.b16 %v1644
        %v1838 = vunpack.c.l.b16 %v1645
        %v1839 = vunpack.c.h.b16 %v1645
        %v1840 = vunpack.c.l.b16 %v1646
        %v1841 = vunpack.c.h.b16 %v1646
        %v1842 = vunpack.c.l.b16 %v1647
        %v1843 = vunpack.c.h.b16 %v1647
        %v1844 = vunpack.c.l.b16 %v1648
        %v1845 = vunpack.c.h.b16 %v1648
        %v1846 = vunpack.c.l.b16 %v1649
        %v1847 = vunpack.c.h.b16 %v1649
        %v1848 = vunpack.c.l.b16 %v1650
        %v1849 = vunpack.c.h.b16 %v1650
        %v1850 = vunpack.c.l.b16 %v1651
        %v1851 = vunpack.c.h.b16 %v1651
        %v1852 = vunpack.c.l.b16 %v1652
        %v1853 = vunpack.c.h.b16 %v1652
        %v1854 = vunpack.c.l.b16 %v1653
        %v1855 = vunpack.c.h.b16 %v1653
        %v1856 = vunpack.c.l.b16 %v1654
        %v1857 = vunpack.c.h.b16 %v1654
        %v1858 = vunpack.c.l.b16 %v1655
        %v1859 = vunpack.c.h.b16 %v1655
        %v1860 = vpack.c.b16 %v1734, %v1732
        %v1861 = vpack.c.b16 %v1735, %v1733
        %v1862 = vpack.c.b16 %v1738, %v1736
        %v1863 = vpack.c.b16 %v1739, %v1737
        %v1864 = vpack.c.b16 %v1742, %v1740
        %v1865 = vpack.c.b16 %v1743, %v1741
        %v1866 = vpack.c.b16 %v1746, %v1744
        %v1867 = vpack.c.b16 %v1747, %v1745
        %v1868 = vpack.c.b16 %v1750, %v1748
        %v1869 = vpack.c.b16 %v1751, %v1749
        %v1870 = vpack.c.b16 %v1754, %v1752
        %v1871 = vpack.c.b16 %v1755, %v1753
        %v1872 = vpack.c.b16 %v1758, %v1756
        %v1873 = vpack.c.b16 %v1759, %v1757
        %v1874 = vpack.c.b16 %v1762, %v1760
        %v1875 = vpack.c.b16 %v1763, %v1761
        %v1876 = vpack.c.b16 %v1766, %v1764
        %v1877 = vpack.c.b16 %v1767, %v1765
        %v1878 = vpack.c.b16 %v1770, %v1768
        %v1879 = vpack.c.b16 %v1771, %v1769
        %v1880 = vpack.c.b16 %v1774, %v1772
        %v1881 = vpack.c.b16 %v1775, %v1773
        %v1882 = vpack.c.b16 %v1778, %v1776
        %v1883 = vpack.c.b16 %v1779, %v1777
        %v1884 = vpack.c.b16 %v1782, %v1780
        %v1885 = vpack.c.b16 %v1783, %v1781
        %v1886 = vpack.c.b16 %v1786, %v1784
        %v1887 = vpack.c.b16 %v1787, %v1785
        %v1888 = vpack.c.b16 %v1790, %v1788
        %v1889 = vpack.c.b16 %v1791, %v1789
        %v1890 = vpack.c.b16 %v1794, %v1792
        %v1891 = vpack.c.b16 %v1795, %v1793
        %v1892 = vpack.c.b16 %v1798, %v1796
        %v1893 = vpack.c.b16 %v1799, %v1797
        %v1894 = vpack.c.b16 %v1802, %v1800
        %v1895 = vpack.c.b16 %v1803, %v1801
        %v1896 = vpack.c.b16 %v1806, %v1804
        %v1897 = vpack.c.b16 %v1807, %v1805
        %v1898 = vpack.c.b16 %v1810, %v1808
        %v1899 = vpack.c.b16 %v1811, %v1809
        %v1900 = vpack.c.b16 %v1814, %v1812
        %v1901 = vpack.c.b16 %v1815, %v1813
        %v1902 = vpack.c.b16 %v1818, %v1816
        %v1903 = vpack.c.b16 %v1819, %v1817
        %v1904 = vpack.c.b16 %v1822, %v1820
        %v1905 = vpack.c.b16 %v1823, %v1821
        %v1906 = vpack.c.b16 %v1826, %v1824
        %v1907 = vpack.c.b16 %v1827, %v1825
        %v1908 = vpack.c.b16 %v1830, %v1828
        %v1909 = vpack.c.b16 %v1831, %v1829
        %v1910 = vpack.c.b16 %v1834, %v1832
        %v1911 = vpack.c.b16 %v1835, %v1833
        %v1912 = vpack.c.b16 %v1838, %v1836
        %v1913 = vpack.c.b16 %v1839, %v1837
        %v1914 = vpack.c.b16 %v1842, %v1840
        %v1915 = vpack.c.b16 %v1843, %v1841
        %v1916 = vpack.c.b16 %v1846, %v1844
        %v1917 = vpack.c.b16 %v1847, %v1845
        %v1918 = vpack.c.b16 %v1850, %v1848
        %v1919 = vpack.c.b16 %v1851, %v1849
        %v1920 = vpack.c.b16 %v1854, %v1852
        %v1921 = vpack.c.b16 %v1855, %v1853
        %v1922 = vpack.c.b16 %v1858, %v1856
        %v1923 = vpack.c.b16 %v1859, %v1857
        %1988 = vmatprep.subr.bf16.mxu0 %v1861
        %1989 = vmatpush1.bf16.msra.mxu0 %v1860
        %1990 = vmatprep.subr.bf16.mxu0 %v1863
        %1991 = vmatpush1.bf16.msra.mxu0 %v1862
        %1992 = vmatprep.subr.bf16.mxu0 %v1865
        %1993 = vmatpush1.bf16.msra.mxu0 %v1864
        %1994 = vmatprep.subr.bf16.mxu0 %v1867
        %1995 = vmatpush1.bf16.msra.mxu0 %v1866
        %1996 = vmatprep.subr.bf16.mxu0 %v1869
        %1997 = vmatpush1.bf16.msra.mxu0 %v1868
        %1998 = vmatprep.subr.bf16.mxu0 %v1871
        %1999 = vmatpush1.bf16.msra.mxu0 %v1870
        %2000 = vmatprep.subr.bf16.mxu0 %v1873
        %2001 = vmatpush1.bf16.msra.mxu0 %v1872
        %2002 = vmatprep.subr.bf16.mxu0 %v1875
        %2003 = vmatpush1.bf16.msra.mxu0 %v1874
        %2004 = vmatprep.subr.bf16.mxu0 %v1877
        %2005 = vmatpush1.bf16.msra.mxu0 %v1876
        %2006 = vmatprep.subr.bf16.mxu0 %v1879
        %2007 = vmatpush1.bf16.msra.mxu0 %v1878
        %2008 = vmatprep.subr.bf16.mxu0 %v1881
        %2009 = vmatpush1.bf16.msra.mxu0 %v1880
        %2010 = vmatprep.subr.bf16.mxu0 %v1883
        %2011 = vmatpush1.bf16.msra.mxu0 %v1882
        %2012 = vmatprep.subr.bf16.mxu0 %v1885
        %2013 = vmatpush1.bf16.msra.mxu0 %v1884
        %2014 = vmatprep.subr.bf16.mxu0 %v1887
        %2015 = vmatpush1.bf16.msra.mxu0 %v1886
        %2016 = vmatprep.subr.bf16.mxu0 %v1889
        %2017 = vmatpush1.bf16.msra.mxu0 %v1888
        %2018 = vmatprep.subr.bf16.mxu0 %v1891
        %2019 = vmatpush1.bf16.msra.mxu0 %v1890
        %2020 = vmatprep.mubr.bf16.mxu0 %v1585
        %2021 = vmatmul.mubr.bf16.gmra.mrb[0].mxu0 %v1584
        %v2022 = vpop.f32.mrb[0].mxu0
        %v2023 = vadd.f32 %v1661, %v2022
        %v2024 = vpop.f32.mrb[0].mxu0
        %v2025 = vadd.f32 %v1665, %v2024
        %v2026 = vpop.f32.mrb[0].mxu0
        %v2027 = vadd.f32 %v1661, %v2026
        %v2028 = vpop.f32.mrb[0].mxu0
        %v2029 = vadd.f32 %v1665, %v2028
        %2030 = vmatprep.mubr.bf16.mxu0 %v1589
        %2031 = vmatmul.mubr.bf16.gmra.mrb[0].mxu0 %v1588
        %v2032 = vpop.f32.mrb[0].mxu0
        %v2033 = vadd.f32 %v1661, %v2032
        %v2034 = vpop.f32.mrb[0].mxu0
        %v2035 = vadd.f32 %v1665, %v2034
        %v2036 = vpop.f32.mrb[0].mxu0
        %v2037 = vadd.f32 %v1661, %v2036
        %v2038 = vpop.f32.mrb[0].mxu0
        %v2039 = vadd.f32 %v1665, %v2038
        %2040 = vdwg.mxu0
        %2041 = vmatprep.subr.bf16.mxu0 %v1893
        %2042 = vmatpush1.bf16.msra.mxu0 %v1892
        %2043 = vmatprep.subr.bf16.mxu0 %v1895
        %2044 = vmatpush1.bf16.msra.mxu0 %v1894
        %2045 = vmatprep.subr.bf16.mxu0 %v1897
        %2046 = vmatpush1.bf16.msra.mxu0 %v1896
        %2047 = vmatprep.subr.bf16.mxu0 %v1899
        %2048 = vmatpush1.bf16.msra.mxu0 %v1898
        %2049 = vmatprep.subr.bf16.mxu0 %v1901
        %2050 = vmatpush1.bf16.msra.mxu0 %v1900
        %2051 = vmatprep.subr.bf16.mxu0 %v1903
        %2052 = vmatpush1.bf16.msra.mxu0 %v1902
        %2053 = vmatprep.subr.bf16.mxu0 %v1905
        %2054 = vmatpush1.bf16.msra.mxu0 %v1904
        %2055 = vmatprep.subr.bf16.mxu0 %v1907
        %2056 = vmatpush1.bf16.msra.mxu0 %v1906
        %2057 = vmatprep.subr.bf16.mxu0 %v1909
        %2058 = vmatpush1.bf16.msra.mxu0 %v1908
        %2059 = vmatprep.subr.bf16.mxu0 %v1911
        %2060 = vmatpush1.bf16.msra.mxu0 %v1910
        %2061 = vmatprep.subr.bf16.mxu0 %v1913
        %2062 = vmatpush1.bf16.msra.mxu0 %v1912
        %2063 = vmatprep.subr.bf16.mxu0 %v1915
        %2064 = vmatpush1.bf16.msra.mxu0 %v1914
        %2065 = vmatprep.subr.bf16.mxu0 %v1917
        %2066 = vmatpush1.bf16.msra.mxu0 %v1916
        %2067 = vmatprep.subr.bf16.mxu0 %v1919
        %2068 = vmatpush1.bf16.msra.mxu0 %v1918
        %2069 = vmatprep.subr.bf16.mxu0 %v1921
        %2070 = vmatpush1.bf16.msra.mxu0 %v1920
        %2071 = vmatprep.subr.bf16.mxu0 %v1923
        %2072 = vmatpush1.bf16.msra.mxu0 %v1922
        %2073 = vmatprep.mubr.bf16.mxu0 %v1587
        %2074 = vmatmul.mubr.bf16.gmra.mrb[0].mxu0 %v1586
        %v2075 = vpop.f32.mrb[0].mxu0
        %v2076 = vadd.f32 %v2023, %v2075
        %v2077 = vpop.f32.mrb[0].mxu0
        %v2078 = vadd.f32 %v2025, %v2077
        %v2079 = vpop.f32.mrb[0].mxu0
        %v2080 = vadd.f32 %v2027, %v2079
        %v2081 = vpop.f32.mrb[0].mxu0
        %v2082 = vadd.f32 %v2029, %v2081
        %2083 = vmatprep.mubr.bf16.mxu0 %v1591
        %2084 = vmatmul.mubr.bf16.gmra.mrb[0].mxu0 %v1590
        %v2085 = vpop.f32.mrb[0].mxu0
        %v2086 = vadd.f32 %v2033, %v2085
        %v2087 = vpop.f32.mrb[0].mxu0
        %v2088 = vadd.f32 %v2035, %v2087
        %v2089 = vpop.f32.mrb[0].mxu0
        %v2090 = vadd.f32 %v2037, %v2089
        %v2091 = vpop.f32.mrb[0].mxu0
        %v2092 = vadd.f32 %v2039, %v2091
        %2093 = vdwg.mxu0
        %v2094 = vld [vmem:[%s11] sm:$0x3]
        %v2095 = vld [vmem:[%s12] sm:$0x3]
        %v2096 = vadd.f32 %v2076, %v2078
        %2097 = vadd.xlane.f32.xlu0 %v2096
        %v2098 = vpop.xlane.xlu0 %2097
        %v2099 = vadd.f32 %v2080, %v2082
        %2100 = vadd.xlane.f32.xlu0 %v2099
        %v2101 = vpop.xlane.xlu0 %2100
        %v2102 = vadd.f32 %v2086, %v2088
        %2103 = vadd.xlane.f32.xlu0 %v2102
        %v2104 = vpop.xlane.xlu0 %2103
        %v2105 = vadd.f32 %v2090, %v2092
        %2106 = vadd.xlane.f32.xlu0 %v2105
        %v2107 = vpop.xlane.xlu0 %2106
        %v2108 = vmul.f32 %v2076, %v2076
        %v2109 = vmul.f32 %v2078, %v2078
        %v2110 = vmul.f32 %v2080, %v2080
        %v2111 = vmul.f32 %v2082, %v2082
        %v2112 = vmul.f32 %v2086, %v2086
        %v2113 = vmul.f32 %v2088, %v2088
        %v2114 = vmul.f32 %v2090, %v2090
        %v2115 = vmul.f32 %v2092, %v2092
        %v2116 = vadd.f32 %v2108, %v2109
        %2117 = vadd.xlane.f32.xlu0 %v2116
        %v2118 = vpop.xlane.xlu0 %2117
        %v2119 = vadd.f32 %v2110, %v2111
        %2120 = vadd.xlane.f32.xlu0 %v2119
        %v2121 = vpop.xlane.xlu0 %2120
        %v2122 = vadd.f32 %v2112, %v2113
        %2123 = vadd.xlane.f32.xlu0 %v2122
        %v2124 = vpop.xlane.xlu0 %2123
        %v2125 = vadd.f32 %v2114, %v2115
        %2126 = vadd.xlane.f32.xlu0 %v2125
        %v2127 = vpop.xlane.xlu0 %2126
        %v2128 = vmul.f32 %v2098, 0.00390625
        %v2129 = vmul.f32 %v2101, 0.00390625
        %v2130 = vmul.f32 %v2104, 0.00390625
        %v2131 = vmul.f32 %v2107, 0.00390625
        %v2132 = vmul.f32 %v2118, 0.00390625
        %v2133 = vmul.f32 %v2121, 0.00390625
        %v2134 = vmul.f32 %v2124, 0.00390625
        %v2135 = vmul.f32 %v2127, 0.00390625
        %v2136 = vmul.f32 %v2128, %v2128
        %v2137 = vmul.f32 %v2129, %v2129
        %v2138 = vmul.f32 %v2130, %v2130
        %v2139 = vmul.f32 %v2131, %v2131
        %v2140 = vsub.f32 %v2132, %v2136
        %v2141 = vsub.f32 %v2133, %v2137
        %v2142 = vsub.f32 %v2134, %v2138
        %v2143 = vsub.f32 %v2135, %v2139
        %v2144 = vadd.f32 %v2140, 1e-05
        %v2145 = vadd.f32 %v2141, 1e-05
        %v2146 = vadd.f32 %v2142, 1e-05
        %v2147 = vadd.f32 %v2143, 1e-05
        %v2148 = vrsqrt.pop %v2144
        %v2149 = vrsqrt.pop %v2145
        %v2150 = vrsqrt.pop %v2146
        %v2151 = vrsqrt.pop %v2147
        %v2152 = vsub.f32 %v2076, %v2128
        %v2153 = vsub.f32 %v2078, %v2128
        %v2154 = vsub.f32 %v2080, %v2129
        %v2155 = vsub.f32 %v2082, %v2129
        %v2156 = vsub.f32 %v2086, %v2130
        %v2157 = vsub.f32 %v2088, %v2130
        %v2158 = vsub.f32 %v2090, %v2131
        %v2159 = vsub.f32 %v2092, %v2131
        %v2161 = vlaneseq
        %v2162 = vshrl.u32 %v2161, 7
        %v2163 = vsub.s32 0, %v2162
        %v2164 = vrot.slane %v2094, %v2163
        %v2165 = vlaneseq
        %v2166 = vshrl.u32 %v2165, 7
        %v2167 = vsub.s32 1, %v2166
        %v2168 = vrot.slane %v2094, %v2167
        %v2171 = vmul.f32 %v2148, %v2164
        %v2172 = vmul.f32 %v2148, %v2168
        %v2173 = vmul.f32 %v2149, %v2164
        %v2174 = vmul.f32 %v2149, %v2168
        %v2175 = vmul.f32 %v2150, %v2164
        %v2176 = vmul.f32 %v2150, %v2168
        %v2177 = vmul.f32 %v2151, %v2164
        %v2178 = vmul.f32 %v2151, %v2168
        %v2179 = vmul.f32 %v2152, %v2171
        %v2180 = vmul.f32 %v2153, %v2172
        %v2181 = vmul.f32 %v2154, %v2173
        %v2182 = vmul.f32 %v2155, %v2174
        %v2183 = vmul.f32 %v2156, %v2175
        %v2184 = vmul.f32 %v2157, %v2176
        %v2185 = vmul.f32 %v2158, %v2177
        %v2186 = vmul.f32 %v2159, %v2178
        %v2188 = vlaneseq
        %v2189 = vshrl.u32 %v2188, 7
        %v2190 = vsub.s32 0, %v2189
        %v2191 = vrot.slane %v2095, %v2190
        %v2192 = vlaneseq
        %v2193 = vshrl.u32 %v2192, 7
        %v2194 = vsub.s32 1, %v2193
        %v2195 = vrot.slane %v2095, %v2194
        %v2198 = vadd.f32 %v2179, %v2191
        %v2199 = vadd.f32 %v2180, %v2195
        %v2200 = vadd.f32 %v2181, %v2191
        %v2201 = vadd.f32 %v2182, %v2195
        %v2202 = vadd.f32 %v2183, %v2191
        %v2203 = vadd.f32 %v2184, %v2195
        %v2204 = vadd.f32 %v2185, %v2191
        %v2205 = vadd.f32 %v2186, %v2195
        %v2206 = vmul.f32 %v2198, 0.2
        %v2207 = vmul.f32 %v2199, 0.2
        %v2208 = vmul.f32 %v2200, 0.2
        %v2209 = vmul.f32 %v2201, 0.2
        %v2210 = vmul.f32 %v2202, 0.2
        %v2211 = vmul.f32 %v2203, 0.2
        %v2212 = vmul.f32 %v2204, 0.2
        %v2213 = vmul.f32 %v2205, 0.2
        %v2214 = vmax.f32 %v2198, %v2206
        %v2215 = vmax.f32 %v2199, %v2207
        %v2216 = vmax.f32 %v2200, %v2208
        %v2217 = vmax.f32 %v2201, %v2209
        %v2218 = vmax.f32 %v2202, %v2210
        %v2219 = vmax.f32 %v2203, %v2211
        %v2220 = vmax.f32 %v2204, %v2212
        %v2221 = vmax.f32 %v2205, %v2213
        %v2222 = vpack.c.bf16 %v2216, %v2214
        %v2223 = vpack.c.bf16 %v2217, %v2215
        %v2224 = vpack.c.bf16 %v2220, %v2218
        %v2225 = vpack.c.bf16 %v2221, %v2219
        %v2226 = vadd.bf16 %v2222, %v848
        %v2227 = vadd.bf16 %v2223, %v849
        %v2228 = vadd.bf16 %v2224, %v850
        %v2229 = vadd.bf16 %v2225, %v851
        %v2230 = vld [vmem:[#allocation6] sm:$0xf]
        %v2231 = vld [vmem:[#allocation6 + $0x4] sm:$0xf]
        %v2232 = vld [vmem:[#allocation6 + $0x8] sm:$0xf]
        %v2233 = vld [vmem:[#allocation6 + $0xc] sm:$0xf]
        %v2234 = vld [vmem:[#allocation6 + $0x10] sm:$0xf]
        %v2235 = vld [vmem:[#allocation6 + $0x14] sm:$0xf]
        %v2236 = vld [vmem:[#allocation6 + $0x18] sm:$0xf]
        %v2237 = vld [vmem:[#allocation6 + $0x1c] sm:$0xf]
        %v2238 = vld [vmem:[#allocation6 + $0x20] sm:$0xf]
        %v2239 = vld [vmem:[#allocation6 + $0x24] sm:$0xf]
        %v2240 = vld [vmem:[#allocation6 + $0x28] sm:$0xf]
        %v2241 = vld [vmem:[#allocation6 + $0x2c] sm:$0xf]
        %v2242 = vld [vmem:[#allocation6 + $0x30] sm:$0xf]
        %v2243 = vld [vmem:[#allocation6 + $0x34] sm:$0xf]
        %v2244 = vld [vmem:[#allocation6 + $0x38] sm:$0xf]
        %v2245 = vld [vmem:[#allocation6 + $0x3c] sm:$0xf]
        %v2246 = vld [vmem:[#allocation6 + $0x40] sm:$0xf]
        %v2247 = vld [vmem:[#allocation6 + $0x44] sm:$0xf]
        %v2248 = vld [vmem:[#allocation6 + $0x48] sm:$0xf]
        %v2249 = vld [vmem:[#allocation6 + $0x4c] sm:$0xf]
        %v2250 = vld [vmem:[#allocation6 + $0x50] sm:$0xf]
        %v2251 = vld [vmem:[#allocation6 + $0x54] sm:$0xf]
        %v2252 = vld [vmem:[#allocation6 + $0x58] sm:$0xf]
        %v2253 = vld [vmem:[#allocation6 + $0x5c] sm:$0xf]
        %v2254 = vld [vmem:[#allocation6 + $0x60] sm:$0xf]
        %v2255 = vld [vmem:[#allocation6 + $0x64] sm:$0xf]
        %v2256 = vld [vmem:[#allocation6 + $0x68] sm:$0xf]
        %v2257 = vld [vmem:[#allocation6 + $0x6c] sm:$0xf]
        %v2258 = vld [vmem:[#allocation6 + $0x70] sm:$0xf]
        %v2259 = vld [vmem:[#allocation6 + $0x74] sm:$0xf]
        %v2260 = vld [vmem:[#allocation6 + $0x78] sm:$0xf]
        %v2261 = vld [vmem:[#allocation6 + $0x7c] sm:$0xf]
        %v2262 = vld [vmem:[%s14] sm:$0x1]
        %v2264 = vlaneseq
        %v2265 = vshrl.u32 %v2264, 7
        %v2266 = vsub.s32 0, %v2265
        %v2267 = vrot.slane %v2262, %v2266
        %v2301 = vunpack.c.l.b16 %v2230
        %v2302 = vunpack.c.l.b16 %v2231
        %v2303 = vunpack.c.l.b16 %v2232
        %v2304 = vunpack.c.l.b16 %v2233
        %v2305 = vunpack.c.l.b16 %v2234
        %v2306 = vunpack.c.l.b16 %v2235
        %v2307 = vunpack.c.l.b16 %v2236
        %v2308 = vunpack.c.l.b16 %v2237
        %v2309 = vunpack.c.l.b16 %v2238
        %v2310 = vunpack.c.l.b16 %v2239
        %v2311 = vunpack.c.l.b16 %v2240
        %v2312 = vunpack.c.l.b16 %v2241
        %v2313 = vunpack.c.l.b16 %v2242
        %v2314 = vunpack.c.l.b16 %v2243
        %v2315 = vunpack.c.l.b16 %v2244
        %v2316 = vunpack.c.l.b16 %v2245
        %v2317 = vunpack.c.l.b16 %v2246
        %v2318 = vunpack.c.l.b16 %v2247
        %v2319 = vunpack.c.l.b16 %v2248
        %v2320 = vunpack.c.l.b16 %v2249
        %v2321 = vunpack.c.l.b16 %v2250
        %v2322 = vunpack.c.l.b16 %v2251
        %v2323 = vunpack.c.l.b16 %v2252
        %v2324 = vunpack.c.l.b16 %v2253
        %v2325 = vunpack.c.l.b16 %v2254
        %v2326 = vunpack.c.l.b16 %v2255
        %v2327 = vunpack.c.l.b16 %v2256
        %v2328 = vunpack.c.l.b16 %v2257
        %v2329 = vunpack.c.l.b16 %v2258
        %v2330 = vunpack.c.l.b16 %v2259
        %v2331 = vunpack.c.l.b16 %v2260
        %v2332 = vunpack.c.l.b16 %v2261
        %v2333 = vpack.c.b16 %v2302, %v2301
        %v2334 = vpack.c.b16 %v2304, %v2303
        %v2335 = vpack.c.b16 %v2306, %v2305
        %v2336 = vpack.c.b16 %v2308, %v2307
        %v2337 = vpack.c.b16 %v2310, %v2309
        %v2338 = vpack.c.b16 %v2312, %v2311
        %v2339 = vpack.c.b16 %v2314, %v2313
        %v2340 = vpack.c.b16 %v2316, %v2315
        %v2341 = vpack.c.b16 %v2318, %v2317
        %v2342 = vpack.c.b16 %v2320, %v2319
        %v2343 = vpack.c.b16 %v2322, %v2321
        %v2344 = vpack.c.b16 %v2324, %v2323
        %v2345 = vpack.c.b16 %v2326, %v2325
        %v2346 = vpack.c.b16 %v2328, %v2327
        %v2347 = vpack.c.b16 %v2330, %v2329
        %v2348 = vpack.c.b16 %v2332, %v2331
        %2365 = vmatprep.subr.bf16.mxu0 0
        %2366 = vmatpush1.bf16.msra.mxu0 %v2333
        %2367 = vmatprep.subr.bf16.mxu0 0
        %2368 = vmatpush1.bf16.msra.mxu0 %v2334
        %2369 = vmatprep.subr.bf16.mxu0 0
        %2370 = vmatpush1.bf16.msra.mxu0 %v2335
        %2371 = vmatprep.subr.bf16.mxu0 0
        %2372 = vmatpush1.bf16.msra.mxu0 %v2336
        %2373 = vmatprep.subr.bf16.mxu0 0
        %2374 = vmatpush1.bf16.msra.mxu0 %v2337
        %2375 = vmatprep.subr.bf16.mxu0 0
        %2376 = vmatpush1.bf16.msra.mxu0 %v2338
        %2377 = vmatprep.subr.bf16.mxu0 0
        %2378 = vmatpush1.bf16.msra.mxu0 %v2339
        %2379 = vmatprep.subr.bf16.mxu0 0
        %2380 = vmatpush1.bf16.msra.mxu0 %v2340
        %2381 = vmatprep.subr.bf16.mxu0 0
        %2382 = vmatpush1.bf16.msra.mxu0 %v2341
        %2383 = vmatprep.subr.bf16.mxu0 0
        %2384 = vmatpush1.bf16.msra.mxu0 %v2342
        %2385 = vmatprep.subr.bf16.mxu0 0
        %2386 = vmatpush1.bf16.msra.mxu0 %v2343
        %2387 = vmatprep.subr.bf16.mxu0 0
        %2388 = vmatpush1.bf16.msra.mxu0 %v2344
        %2389 = vmatprep.subr.bf16.mxu0 0
        %2390 = vmatpush1.bf16.msra.mxu0 %v2345
        %2391 = vmatprep.subr.bf16.mxu0 0
        %2392 = vmatpush1.bf16.msra.mxu0 %v2346
        %2393 = vmatprep.subr.bf16.mxu0 0
        %2394 = vmatpush1.bf16.msra.mxu0 %v2347
        %2395 = vmatprep.subr.bf16.mxu0 0
        %2396 = vmatpush1.bf16.msra.mxu0 %v2348
        %2397 = vmatprep.mubr.bf16.mxu0 %v2227
        %2398 = vmatmul.mubr.bf16.gmra.mrb[0].mxu0 %v2226
        %v2399 = vpop.f32.mrb[0].mxu0
        %v2400 = vadd.f32 %v2267, %v2399
        %v2401 = vpop.f32.mrb[0].mxu0
        %v2402 = vpop.f32.mrb[0].mxu0
        %v2403 = vadd.f32 %v2267, %v2402
        %v2404 = vpop.f32.mrb[0].mxu0
        %2405 = vmatprep.mubr.bf16.mxu0 %v2229
        %2406 = vmatmul.mubr.bf16.gmra.mrb[0].mxu0 %v2228
        %v2407 = vpop.f32.mrb[0].mxu0
        %v2408 = vadd.f32 %v2267, %v2407
        %v2409 = vpop.f32.mrb[0].mxu0
        %v2410 = vpop.f32.mrb[0].mxu0
        %v2411 = vadd.f32 %v2267, %v2410
        %v2412 = vpop.f32.mrb[0].mxu0
        %2413 = vdwg.mxu0
        %v2414 = vtanh.pop %v2400
        %v2415 = vtanh.pop %v2403
        %v2416 = vtanh.pop %v2408
        %v2417 = vtanh.pop %v2411
        %2418 = vst [vmem:[%s540] sm:$0xff] %v2414
        %2419 = vst [vmem:[%s540 + $0x8] sm:$0xff] %v2415
        %2420 = vst [vmem:[%s540 + $0x10] sm:$0xff] %v2416
        %2421 = vst [vmem:[%s540 + $0x18] sm:$0xff] %v2417
        %s2422 = smul.u32 4, %s28
        %p2423 = scmp.lt.s32.totalorder %s2422, 7
        %s2424 = scalar_select %p2423, %s2422, 7
        %s2425 = smul.addr %s2424, 8
        %s2426 = scalar_lea.vmem %s15, %s2425
        // Predicated region
        $region93: #{physics_generator.1} parent=79 // pred_check
          %p2427 = pneg %p366
        $region94: #{physics_generator.1} parent=79 // pred_check_branch
          %2429 = sbr.rel (%p2427) target = $region96
        $region95: #{physics_generator.1} parent=79 // pred_region
          %s2430 = smul.u32 4, %s28
        $region96: #{physics_generator.1} parent=79 // pred_fallthru
          _
      $region80: #{physics_generator.1} parent=5 // pred_fallthru
        _
      %p2431 = scmp.le.s32.totalorder 2, %s23
      // Predicated region
      $region97: #{physics_generator.1} parent=5 // pred_check
        %p2432 = pneg %p2431
      $region98: #{physics_generator.1} parent=5 // pred_check_branch
        %2434 = sbr.rel (%p2432) target = $region100
      $region99: #{physics_generator.1} parent=5 // pred_region
        %s2435 = ssub.s32 %s23, 2
        // Predicated region
        $region101: #{physics_generator.1} parent=99 // pred_check
          %p2436 = pneg %p372
        $region102: #{physics_generator.1} parent=99 // pred_check_branch
          %2438 = sbr.rel (%p2436) target = $region104
        $region103: #{physics_generator.1} parent=99 // pred_region
          %s2439 = smul.u32 4, %s29
          %p2440 = scmp.lt.s32.totalorder %s2439, 7
          %s2441 = scalar_select %p2440, %s2439, 7
          %s2442 = smul.addr %s2441, 8
          %s2443 = scalar_lea.vmem %s15, %s2442
        $region104: #{physics_generator.1} parent=99 // pred_fallthru
          _
      $region100: #{physics_generator.1} parent=5 // pred_fallthru
        _
    $region6: #{physics_generator.1} parent=1 // loop_footer
      %s27 = sadd.s32 1, %s23
    $region7: #{physics_generator.1} parent=1 // loop_footer_branch
      %22 = sbr.rel target = $region3
    $region8: #{physics_generator.1} parent=1 // loop_exit
      _
    %2444 = vsyncpa [#allocation3], 1
    %s2445 = scalar_lea.sflag [#allocation3], 1
    %2446 = vsyncpa %s2445, 1
    %2447 = vsyncpa [#allocation5], 1

</llo_original>
